<compile_context>
chip_gen: v7x
topology: tpu7x:2x2x1
jax: 0.10.0
libtpu: 0.0.40
codegen_flags: <defaults>
</compile_context>

<pallas_src>
import jax
import jax.numpy as jnp
from jax.experimental import pallas as pl
from jax.experimental.pallas import tpu as pltpu


T_CHUNK_CAP = 64   # max timesteps per grid step (further bounded by VMEM fit)


def rnn_chunk_kernel(emb_ref, wih_ref, whh_ref, b_ref, out_ref,
                     h_scratch, stage_ref):
    """One grid step = t_chunk timesteps of the RNN recurrence.

    emb_ref   : (T, Bb, E)  bf16  time-major embedding chunk (streamed in)
    wih_ref   : (E, H)      bf16  input->hidden weight (resident)
    whh_ref   : (H, H)      bf16  hidden->hidden weight (resident)
    b_ref     : (1, H)      f32   b_ih + b_hh, pre-summed (resident)
    out_ref   : (Bb, T, H)  f32   batch-first hidden states (streamed out)
    h_scratch : (Bb, H)     f32   recurrent state, persists across time chunks
    stage_ref : (T, Bb, H)  f32   staging: chunk input projection, then h_t
    """
    c = pl.program_id(1)                     # time-chunk index (inner, serial)

    @pl.when(c == 0)
    def _():
        h_scratch[...] = jnp.zeros_like(h_scratch)

    tc, bb, _ = emb_ref.shape
    wih = wih_ref[...]
    whh = whh_ref[...]                       # held in vregs across the loop
    bias = jnp.broadcast_to(b_ref[...], (bb, whh.shape[1]))   # hoisted bcast

    # ---- chunk input projection (time-independent, off the serial path) ----
    # P[t] = x_t @ W_ih + b for the whole chunk, parked in VMEM staging.
    # TODO(synk): with b_blk a multiple of 8 this could be one flattened
    #             (T*Bb, E) x (E, H) matmul; per-t matmuls kept for layout
    #             safety at small / unaligned test shapes.
    for t in range(tc):
        stage_ref[t] = (
            jnp.dot(emb_ref[t], wih, preferred_element_type=jnp.float32)
            + bias)

    # ---- serial recurrence: one (Bb,H)x(H,H) bf16 MXU pass + one tanh/step --
    def step(t, h):
        h_new = jnp.tanh(
            stage_ref[t]
            + jnp.dot(h.astype(whh.dtype), whh,
                      preferred_element_type=jnp.float32))
        stage_ref[t] = h_new             # reuse staging buffer for the outputs
        return h_new

    h_final = jax.lax.fori_loop(0, tc, step, h_scratch[...],
                                unroll=min(8, tc))
    h_scratch[...] = h_final

    # ---- batch-first writeback (static sublane-strided VMEM stores) --------
    # Avoids a full (S,B,H) HBM transpose pass in the wrapper; stores ride the
    # store slot, off the serial critical path.
    for t in range(tc):
        out_ref[:, t, :] = stage_ref[t]


# ----------------------------- tiling heuristics -----------------------------

def _tpu_info():
    try:
        return pltpu.get_tpu_info()
    except Exception:
        return None


def _vmem_capacity_bytes():
    info = _tpu_info()
    if info is not None:
        cap = getattr(info, "vmem_capacity_bytes", None)
        if cap:
            return int(cap)
    return 64 * 1024 * 1024              # conservative default (v7x per-core)


def _num_tensorcores():
    info = _tpu_info()
    if info is not None:
        for name in ("num_cores", "core_count", "num_tensorcores",
                     "tensorcore_count"):
            v = getattr(info, name, None)
            if isinstance(v, int) and v > 0:
                return v
    try:
        dev = jax.devices()[0]
        for name in ("num_cores", "core_count"):
            v = getattr(dev, name, None)
            if isinstance(v, int) and v > 0:
                return v
    except Exception:
        pass
    return 1


def _pick_tiling(B, S, E, H):
    """Derive (b_blk, t_chunk, vmem_limit) from VMEM capacity and core count."""
    vmem_cap = _vmem_capacity_bytes()
    # 96 MiB on 128-MiB parts (v5e/v6e), 48 MiB on 64-MiB parts (v7x).
    vmem_limit = min(int(0.75 * vmem_cap), 96 * 1024 * 1024)

    # Batch split only where it pays: >= 2 TensorCores, large batch, and
    # sublane-aligned halves.  On single-TC v5e/v6e a split just re-runs the
    # serial time loop per half batch (~2x slower), so keep nb = 1 there.
    n_cores = _num_tensorcores()
    if n_cores >= 2 and B >= 256 and B % 2 == 0 and (B // 2) % 8 == 0:
        b_blk = B // 2
    else:
        b_blk = B

    # VMEM budget: double-buffered emb in (bf16) + out (f32), f32 staging
    # scratch, resident (double-buffered) weights, recurrent state, slack.
    w_bytes = 2 * (E * H + H * H) * 2 + 2 * H * 4
    state_bytes = b_blk * H * 4
    per_t = b_blk * (2 * E * 2 + 2 * H * 4 + H * 4)
    budget = vmem_limit - w_bytes - state_bytes - (4 << 20)
    t_fit = max(1, budget // max(1, per_t))

    t_chunk = int(min(S, T_CHUNK_CAP, t_fit))
    if t_chunk < S:
        # Sublane-align, and prefer a chunk that divides S so no padded
        # (wasted) recurrence steps run in the last chunk.
        t_chunk = max(8, (t_chunk // 8) * 8)
        for cand in range(t_chunk, max(7, t_chunk // 2), -8):
            if S % cand == 0:
                t_chunk = cand
                break
    return b_blk, max(1, t_chunk), int(vmem_limit)


# --------------------------------- wrapper -----------------------------------

def encoder_forward(tokens, params):
    """tokens: (B, S) int32.  Returns (output (B, S, H), hidden (1, B, Hd))."""
    emb_table = params["emb"]            # (V, E)
    w_ih = params["w_ih"]                # (E, H)
    w_hh = params["w_hh"]                # (H, H)
    b_rnn = params["b_rnn"]              # (1, H)  (= b_ih + b_hh, pre-summed)
    w1, b1 = params["w1"], params["b1"]  # (H, H), (1, H)
    w2, b2 = params["w2"], params["b2"]  # (H, Hd), (1, Hd)

    B, S = tokens.shape
    E, H = w_ih.shape

    b_blk, t_chunk, vmem_limit = _pick_tiling(B, S, E, H)
    s_pad = pl.cdiv(S, t_chunk) * t_chunk
    nb, nc = B // b_blk, s_pad // t_chunk

    # bf16 streaming of activations / weights (f32 accumulation in-kernel).
    # TODO(synk): nn.Dropout not applied (eval-mode identity); no RNG mask.
    # TODO(synk): pad H to a multiple of 128 at production sizes for dense
    #             lane layout (test H=32 relies on full-dim blocks).
    emb_tbl = emb_table.astype(jnp.bfloat16)
    wih = w_ih.astype(jnp.bfloat16)
    whh = w_hh.astype(jnp.bfloat16)

    tokens_p = tokens
    if s_pad != S:
        tokens_p = jnp.pad(tokens, ((0, 0), (0, s_pad - S)))
    # Embedding gather directly in time-major layout (no HBM transpose pass).
    emb_tm = jnp.take(emb_tbl, tokens_p.T, axis=0)          # (s_pad, B, E)

    out = pl.pallas_call(
        rnn_chunk_kernel,
        out_shape=jax.ShapeDtypeStruct((B, s_pad, H), jnp.float32),
        grid_spec=pltpu.PrefetchScalarGridSpec(
            num_scalar_prefetch=0,
            grid=(nb, nc),                           # batch outer, time inner
            in_specs=[
                pl.BlockSpec((t_chunk, b_blk, E), lambda b, c: (c, b, 0)),
                pl.BlockSpec((E, H), lambda b, c: (0, 0)),   # W_ih resident
                pl.BlockSpec((H, H), lambda b, c: (0, 0)),   # W_hh resident
                pl.BlockSpec((1, H), lambda b, c: (0, 0)),   # bias resident
            ],
            out_specs=pl.BlockSpec((b_blk, t_chunk, H), lambda b, c: (b, c, 0)),
            scratch_shapes=[
                pltpu.VMEM((b_blk, H), jnp.float32),           # recurrent state
                pltpu.VMEM((t_chunk, b_blk, H), jnp.float32),  # chunk staging
            ],
        ),
        compiler_params=pltpu.CompilerParams(
            # batch blocks are independent; time chunks carry the recurrence
            dimension_semantics=("parallel", "arbitrary"),
            vmem_limit_bytes=vmem_limit,
        ),
    )(emb_tm, wih, whh, b_rnn)

    output = out if s_pad == S else out[:, :S, :]            # (B, S, H) f32

    # Final hidden -> Linear -> ReLU -> Linear -> Tanh.  One tiny (B,H) matmul
    # chain: plain XLA per review (no extra pallas_call launch / HBM staging).
    h_last = output[:, S - 1, :]                             # (B, H)
    z = jnp.maximum(h_last @ w1 + b1, 0.0)
    hidden = jnp.tanh(z @ w2 + b2)
    return output, hidden[None, :, :]                        # (1, B, Hd)


# ------------------------------ params & reference ---------------------------

def init_params(key, vocab, emb_size, enc_hidden, dec_hidden):
    ks = jax.random.split(key, 10)
    scale = 0.1
    return {
        "emb":  scale * jax.random.normal(ks[0], (vocab, emb_size), jnp.float32),
        "w_ih": scale * jax.random.normal(ks[1], (emb_size, enc_hidden), jnp.float32),
        "w_hh": scale * jax.random.normal(ks[2], (enc_hidden, enc_hidden), jnp.float32),
        "b_rnn": scale * jax.random.normal(ks[3], (1, enc_hidden), jnp.float32),
        "w1":   scale * jax.random.normal(ks[4], (enc_hidden, enc_hidden), jnp.float32),
        "b1":   scale * jax.random.normal(ks[5], (1, enc_hidden), jnp.float32),
        "w2":   scale * jax.random.normal(ks[6], (enc_hidden, dec_hidden), jnp.float32),
        "b2":   scale * jax.random.normal(ks[7], (1, dec_hidden), jnp.float32),
    }


def encoder_forward_ref(tokens, params):
    """Pure-JAX f32 reference for validation."""
    emb = jnp.take(params["emb"], tokens, axis=0)            # (B, S, E)
    B, S, _ = emb.shape
    H = params["w_hh"].shape[0]

    def step(h, x_t):
        h_new = jnp.tanh(x_t @ params["w_ih"] + h @ params["w_hh"] + params["b_rnn"])
        return h_new, h_new

    h0 = jnp.zeros((B, H), jnp.float32)
    h_last, outs = jax.lax.scan(step, h0, jnp.transpose(emb, (1, 0, 2)))
    output = jnp.transpose(outs, (1, 0, 2))
    z = jnp.maximum(h_last @ params["w1"] + params["b1"], 0.0)
    hidden = jnp.tanh(z @ params["w2"] + params["b2"])[None]
    return output, hidden


if __name__ == "__main__":
    key = jax.random.PRNGKey(0)
    k_tok, k_par = jax.random.split(key)

    # Small, shape-consistent config: vocab=16, emb=32, enc_hidden=32, dec_hidden=32
    B, S, V, E, H, Hd = 2, 8, 16, 32, 32, 32
    tokens = jax.random.randint(k_tok, (B, S), 0, V, dtype=jnp.int32)
    params = init_params(k_par, V, E, H, Hd)

    output, hidden = jax.jit(encoder_forward)(tokens, params)
    output = jax.block_until_ready(output)
    hidden = jax.block_until_ready(hidden)

    out_ref, hid_ref = encoder_forward_ref(tokens, params)
    assert output.shape == (B, S, H) and hidden.shape == (1, B, Hd)
    # bf16-streamed activations/weights -> tolerance relaxed vs the f32 ref.
    assert jnp.allclose(output, out_ref, atol=2e-2, rtol=2e-2), \
        float(jnp.max(jnp.abs(output - out_ref)))
    assert jnp.allclose(hidden, hid_ref, atol=2e-2, rtol=2e-2), \
        float(jnp.max(jnp.abs(hidden - hid_ref)))

    print("KERNEL_OK")
</pallas_src>

<mosaic_0001>
module attributes {stable_mosaic.version = 11 : i64} {
  func.func @rnn_chunk_kernel(%arg0: i32, %arg1: i32, %arg2: memref<8x2x32xbf16, #tpu.memory_space<vmem>>, %arg3: memref<32x32xbf16, #tpu.memory_space<vmem>>, %arg4: memref<32x32xbf16, #tpu.memory_space<vmem>>, %arg5: memref<1x32xf32, #tpu.memory_space<vmem>>, %arg6: memref<2x8x32xf32, #tpu.memory_space<vmem>>, %arg7: memref<2x32xf32, #tpu.memory_space<vmem>>, %arg8: memref<8x2x32xf32, #tpu.memory_space<vmem>>) attributes {dimension_semantics = [#tpu.dimension_semantics<parallel>, #tpu.dimension_semantics<arbitrary>], iteration_bounds = array<i64: 1, 1>, scalar_prefetch = 0 : i64, scratch_operands = 2 : i64, tpu.core_type = #tpu.core_type<tc>, window_params = [{transform_indices = @transform_0, window_bounds = array<i64: 8, 2, 32>}, {pipeline_mode = #tpu.pipeline_mode<synchronous>, transform_indices = @transform_1, window_bounds = array<i64: 32, 32>}, {pipeline_mode = #tpu.pipeline_mode<synchronous>, transform_indices = @transform_2, window_bounds = array<i64: 32, 32>}, {pipeline_mode = #tpu.pipeline_mode<synchronous>, transform_indices = @transform_3, window_bounds = array<i64: 1, 32>}, {transform_indices = @transform_4, window_bounds = array<i64: 2, 8, 32>}]} {
    %c0_i32 = arith.constant 0 : i32
    %0 = arith.cmpi eq, %arg1, %c0_i32 : i32
    %1 = arith.extui %0 : i1 to i32
    %c0_i32_0 = arith.constant 0 : i32
    %2 = arith.cmpi ne, %1, %c0_i32_0 : i32
    scf.if %2 {
      %cst_147 = arith.constant 0.000000e+00 : f32
      %194 = vector.broadcast %cst_147 : f32 to vector<2x32xf32>
      %c0_148 = arith.constant 0 : index
      %c0_149 = arith.constant 0 : index
      %195 = vector.load %arg7[%c0_148, %c0_149] : memref<2x32xf32, #tpu.memory_space<vmem>>, vector<2x32xf32>
      tpu.vector_store %arg7[%c0_148, %c0_149], %194 {strides = array<i32>} : memref<2x32xf32, #tpu.memory_space<vmem>>, vector<2x32xf32>,
    } else {
    }
    %c0 = arith.constant 0 : index
    %c0_1 = arith.constant 0 : index
    %3 = vector.load %arg3[%c0, %c0_1] : memref<32x32xbf16, #tpu.memory_space<vmem>>, vector<32x32xbf16>
    %c0_2 = arith.constant 0 : index
    %c0_3 = arith.constant 0 : index
    %4 = vector.load %arg4[%c0_2, %c0_3] : memref<32x32xbf16, #tpu.memory_space<vmem>>, vector<32x32xbf16>
    %c0_4 = arith.constant 0 : index
    %c0_5 = arith.constant 0 : index
    %5 = vector.load %arg5[%c0_4, %c0_5] : memref<1x32xf32, #tpu.memory_space<vmem>>, vector<1x32xf32>
    %6 = vector.shape_cast %5 : vector<1x32xf32> to vector<1x32xf32>
    %7 = vector.broadcast %6 : vector<1x32xf32> to vector<2x32xf32>
    %c0_6 = arith.constant 0 : index
    %c0_7 = arith.constant 0 : index
    %c0_8 = arith.constant 0 : index
    %8 = vector.load %arg2[%c0_6, %c0_7, %c0_8] : memref<8x2x32xbf16, #tpu.memory_space<vmem>>, vector<1x2x32xbf16>
    %9 = vector.shape_cast %8 : vector<1x2x32xbf16> to vector<2x32xbf16>
    %cst = arith.constant dense<0.000000e+00> : vector<2x32xf32>
    %10 = tpu.matmul %9, %3, %cst {dimension_numbers = #tpu.dot_dimension_numbers<[1], [0], [0], [1], [0, 0, 1, 1], [], []>} : vector<2x32xbf16>, vector<32x32xbf16>, vector<2x32xf32> -> vector<2x32xf32>
    %11 = arith.addf %10, %7 : vector<2x32xf32>
    %c0_9 = arith.constant 0 : index
    %c0_10 = arith.constant 0 : index
    %c0_11 = arith.constant 0 : index
    %12 = vector.load %arg8[%c0_9, %c0_10, %c0_11] : memref<8x2x32xf32, #tpu.memory_space<vmem>>, vector<1x2x32xf32>
    %13 = vector.shape_cast %12 : vector<1x2x32xf32> to vector<2x32xf32>
    %14 = vector.shape_cast %11 : vector<2x32xf32> to vector<1x2x32xf32>
    tpu.vector_store %arg8[%c0_9, %c0_10, %c0_11], %14 {strides = array<i32>} : memref<8x2x32xf32, #tpu.memory_space<vmem>>, vector<1x2x32xf32>,
    %c1 = arith.constant 1 : index
    %c0_12 = arith.constant 0 : index
    %c0_13 = arith.constant 0 : index
    %15 = vector.load %arg2[%c1, %c0_12, %c0_13] : memref<8x2x32xbf16, #tpu.memory_space<vmem>>, vector<1x2x32xbf16>
    %16 = vector.shape_cast %15 : vector<1x2x32xbf16> to vector<2x32xbf16>
    %cst_14 = arith.constant dense<0.000000e+00> : vector<2x32xf32>
    %17 = tpu.matmul %16, %3, %cst_14 {dimension_numbers = #tpu.dot_dimension_numbers<[1], [0], [0], [1], [0, 0, 1, 1], [], []>} : vector<2x32xbf16>, vector<32x32xbf16>, vector<2x32xf32> -> vector<2x32xf32>
    %18 = arith.addf %17, %7 : vector<2x32xf32>
    %c1_15 = arith.constant 1 : index
    %c0_16 = arith.constant 0 : index
    %c0_17 = arith.constant 0 : index
    %19 = vector.load %arg8[%c1_15, %c0_16, %c0_17] : memref<8x2x32xf32, #tpu.memory_space<vmem>>, vector<1x2x32xf32>
    %20 = vector.shape_cast %19 : vector<1x2x32xf32> to vector<2x32xf32>
    %21 = vector.shape_cast %18 : vector<2x32xf32> to vector<1x2x32xf32>
    tpu.vector_store %arg8[%c1_15, %c0_16, %c0_17], %21 {strides = array<i32>} : memref<8x2x32xf32, #tpu.memory_space<vmem>>, vector<1x2x32xf32>,
    %c2 = arith.constant 2 : index
    %c0_18 = arith.constant 0 : index
    %c0_19 = arith.constant 0 : index
    %22 = vector.load %arg2[%c2, %c0_18, %c0_19] : memref<8x2x32xbf16, #tpu.memory_space<vmem>>, vector<1x2x32xbf16>
    %23 = vector.shape_cast %22 : vector<1x2x32xbf16> to vector<2x32xbf16>
    %cst_20 = arith.constant dense<0.000000e+00> : vector<2x32xf32>
    %24 = tpu.matmul %23, %3, %cst_20 {dimension_numbers = #tpu.dot_dimension_numbers<[1], [0], [0], [1], [0, 0, 1, 1], [], []>} : vector<2x32xbf16>, vector<32x32xbf16>, vector<2x32xf32> -> vector<2x32xf32>
    %25 = arith.addf %24, %7 : vector<2x32xf32>
    %c2_21 = arith.constant 2 : index
    %c0_22 = arith.constant 0 : index
    %c0_23 = arith.constant 0 : index
    %26 = vector.load %arg8[%c2_21, %c0_22, %c0_23] : memref<8x2x32xf32, #tpu.memory_space<vmem>>, vector<1x2x32xf32>
    %27 = vector.shape_cast %26 : vector<1x2x32xf32> to vector<2x32xf32>
    %28 = vector.shape_cast %25 : vector<2x32xf32> to vector<1x2x32xf32>
    tpu.vector_store %arg8[%c2_21, %c0_22, %c0_23], %28 {strides = array<i32>} : memref<8x2x32xf32, #tpu.memory_space<vmem>>, vector<1x2x32xf32>,
    %c3 = arith.constant 3 : index
    %c0_24 = arith.constant 0 : index
    %c0_25 = arith.constant 0 : index
    %29 = vector.load %arg2[%c3, %c0_24, %c0_25] : memref<8x2x32xbf16, #tpu.memory_space<vmem>>, vector<1x2x32xbf16>
    %30 = vector.shape_cast %29 : vector<1x2x32xbf16> to vector<2x32xbf16>
    %cst_26 = arith.constant dense<0.000000e+00> : vector<2x32xf32>
    %31 = tpu.matmul %30, %3, %cst_26 {dimension_numbers = #tpu.dot_dimension_numbers<[1], [0], [0], [1], [0, 0, 1, 1], [], []>} : vector<2x32xbf16>, vector<32x32xbf16>, vector<2x32xf32> -> vector<2x32xf32>
    %32 = arith.addf %31, %7 : vector<2x32xf32>
    %c3_27 = arith.constant 3 : index
    %c0_28 = arith.constant 0 : index
    %c0_29 = arith.constant 0 : index
    %33 = vector.load %arg8[%c3_27, %c0_28, %c0_29] : memref<8x2x32xf32, #tpu.memory_space<vmem>>, vector<1x2x32xf32>
    %34 = vector.shape_cast %33 : vector<1x2x32xf32> to vector<2x32xf32>
    %35 = vector.shape_cast %32 : vector<2x32xf32> to vector<1x2x32xf32>
    tpu.vector_store %arg8[%c3_27, %c0_28, %c0_29], %35 {strides = array<i32>} : memref<8x2x32xf32, #tpu.memory_space<vmem>>, vector<1x2x32xf32>,
    %c4 = arith.constant 4 : index
    %c0_30 = arith.constant 0 : index
    %c0_31 = arith.constant 0 : index
    %36 = vector.load %arg2[%c4, %c0_30, %c0_31] : memref<8x2x32xbf16, #tpu.memory_space<vmem>>, vector<1x2x32xbf16>
    %37 = vector.shape_cast %36 : vector<1x2x32xbf16> to vector<2x32xbf16>
    %cst_32 = arith.constant dense<0.000000e+00> : vector<2x32xf32>
    %38 = tpu.matmul %37, %3, %cst_32 {dimension_numbers = #tpu.dot_dimension_numbers<[1], [0], [0], [1], [0, 0, 1, 1], [], []>} : vector<2x32xbf16>, vector<32x32xbf16>, vector<2x32xf32> -> vector<2x32xf32>
    %39 = arith.addf %38, %7 : vector<2x32xf32>
    %c4_33 = arith.constant 4 : index
    %c0_34 = arith.constant 0 : index
    %c0_35 = arith.constant 0 : index
    %40 = vector.load %arg8[%c4_33, %c0_34, %c0_35] : memref<8x2x32xf32, #tpu.memory_space<vmem>>, vector<1x2x32xf32>
    %41 = vector.shape_cast %40 : vector<1x2x32xf32> to vector<2x32xf32>
    %42 = vector.shape_cast %39 : vector<2x32xf32> to vector<1x2x32xf32>
    tpu.vector_store %arg8[%c4_33, %c0_34, %c0_35], %42 {strides = array<i32>} : memref<8x2x32xf32, #tpu.memory_space<vmem>>, vector<1x2x32xf32>,
    %c5 = arith.constant 5 : index
    %c0_36 = arith.constant 0 : index
    %c0_37 = arith.constant 0 : index
    %43 = vector.load %arg2[%c5, %c0_36, %c0_37] : memref<8x2x32xbf16, #tpu.memory_space<vmem>>, vector<1x2x32xbf16>
    %44 = vector.shape_cast %43 : vector<1x2x32xbf16> to vector<2x32xbf16>
    %cst_38 = arith.constant dense<0.000000e+00> : vector<2x32xf32>
    %45 = tpu.matmul %44, %3, %cst_38 {dimension_numbers = #tpu.dot_dimension_numbers<[1], [0], [0], [1], [0, 0, 1, 1], [], []>} : vector<2x32xbf16>, vector<32x32xbf16>, vector<2x32xf32> -> vector<2x32xf32>
    %46 = arith.addf %45, %7 : vector<2x32xf32>
    %c5_39 = arith.constant 5 : index
    %c0_40 = arith.constant 0 : index
    %c0_41 = arith.constant 0 : index
    %47 = vector.load %arg8[%c5_39, %c0_40, %c0_41] : memref<8x2x32xf32, #tpu.memory_space<vmem>>, vector<1x2x32xf32>
    %48 = vector.shape_cast %47 : vector<1x2x32xf32> to vector<2x32xf32>
    %49 = vector.shape_cast %46 : vector<2x32xf32> to vector<1x2x32xf32>
    tpu.vector_store %arg8[%c5_39, %c0_40, %c0_41], %49 {strides = array<i32>} : memref<8x2x32xf32, #tpu.memory_space<vmem>>, vector<1x2x32xf32>,
    %c6 = arith.constant 6 : index
    %c0_42 = arith.constant 0 : index
    %c0_43 = arith.constant 0 : index
    %50 = vector.load %arg2[%c6, %c0_42, %c0_43] : memref<8x2x32xbf16, #tpu.memory_space<vmem>>, vector<1x2x32xbf16>
    %51 = vector.shape_cast %50 : vector<1x2x32xbf16> to vector<2x32xbf16>
    %cst_44 = arith.constant dense<0.000000e+00> : vector<2x32xf32>
    %52 = tpu.matmul %51, %3, %cst_44 {dimension_numbers = #tpu.dot_dimension_numbers<[1], [0], [0], [1], [0, 0, 1, 1], [], []>} : vector<2x32xbf16>, vector<32x32xbf16>, vector<2x32xf32> -> vector<2x32xf32>
    %53 = arith.addf %52, %7 : vector<2x32xf32>
    %c6_45 = arith.constant 6 : index
    %c0_46 = arith.constant 0 : index
    %c0_47 = arith.constant 0 : index
    %54 = vector.load %arg8[%c6_45, %c0_46, %c0_47] : memref<8x2x32xf32, #tpu.memory_space<vmem>>, vector<1x2x32xf32>
    %55 = vector.shape_cast %54 : vector<1x2x32xf32> to vector<2x32xf32>
    %56 = vector.shape_cast %53 : vector<2x32xf32> to vector<1x2x32xf32>
    tpu.vector_store %arg8[%c6_45, %c0_46, %c0_47], %56 {strides = array<i32>} : memref<8x2x32xf32, #tpu.memory_space<vmem>>, vector<1x2x32xf32>,
    %c7 = arith.constant 7 : index
    %c0_48 = arith.constant 0 : index
    %c0_49 = arith.constant 0 : index
    %57 = vector.load %arg2[%c7, %c0_48, %c0_49] : memref<8x2x32xbf16, #tpu.memory_space<vmem>>, vector<1x2x32xbf16>
    %58 = vector.shape_cast %57 : vector<1x2x32xbf16> to vector<2x32xbf16>
    %cst_50 = arith.constant dense<0.000000e+00> : vector<2x32xf32>
    %59 = tpu.matmul %58, %3, %cst_50 {dimension_numbers = #tpu.dot_dimension_numbers<[1], [0], [0], [1], [0, 0, 1, 1], [], []>} : vector<2x32xbf16>, vector<32x32xbf16>, vector<2x32xf32> -> vector<2x32xf32>
    %60 = arith.addf %59, %7 : vector<2x32xf32>
    %c7_51 = arith.constant 7 : index
    %c0_52 = arith.constant 0 : index
    %c0_53 = arith.constant 0 : index
    %61 = vector.load %arg8[%c7_51, %c0_52, %c0_53] : memref<8x2x32xf32, #tpu.memory_space<vmem>>, vector<1x2x32xf32>
    %62 = vector.shape_cast %61 : vector<1x2x32xf32> to vector<2x32xf32>
    %63 = vector.shape_cast %60 : vector<2x32xf32> to vector<1x2x32xf32>
    tpu.vector_store %arg8[%c7_51, %c0_52, %c0_53], %63 {strides = array<i32>} : memref<8x2x32xf32, #tpu.memory_space<vmem>>, vector<1x2x32xf32>,
    %c0_54 = arith.constant 0 : index
    %c0_55 = arith.constant 0 : index
    %64 = vector.load %arg7[%c0_54, %c0_55] : memref<2x32xf32, #tpu.memory_space<vmem>>, vector<2x32xf32>
    %c0_i32_56 = arith.constant 0 : i32
    %65 = arith.index_cast %c0_i32_56 : i32 to index
    %c0_57 = arith.constant 0 : index
    %c0_58 = arith.constant 0 : index
    %66 = vector.load %arg8[%65, %c0_57, %c0_58] : memref<8x2x32xf32, #tpu.memory_space<vmem>>, vector<1x2x32xf32>
    %67 = vector.shape_cast %66 : vector<1x2x32xf32> to vector<2x32xf32>
    %68 = arith.truncf %64 : vector<2x32xf32> to vector<2x32xbf16>
    %cst_59 = arith.constant dense<0.000000e+00> : vector<2x32xf32>
    %69 = tpu.matmul %68, %4, %cst_59 {dimension_numbers = #tpu.dot_dimension_numbers<[1], [0], [0], [1], [0, 0, 1, 1], [], []>} : vector<2x32xbf16>, vector<32x32xbf16>, vector<2x32xf32> -> vector<2x32xf32>
    %70 = arith.addf %67, %69 : vector<2x32xf32>
    %71 = math.tanh %70 : vector<2x32xf32>
    %72 = arith.index_cast %c0_i32_56 : i32 to index
    %c0_60 = arith.constant 0 : index
    %c0_61 = arith.constant 0 : index
    %73 = vector.load %arg8[%72, %c0_60, %c0_61] : memref<8x2x32xf32, #tpu.memory_space<vmem>>, vector<1x2x32xf32>
    %74 = vector.shape_cast %73 : vector<1x2x32xf32> to vector<2x32xf32>
    %75 = vector.shape_cast %71 : vector<2x32xf32> to vector<1x2x32xf32>
    tpu.vector_store %arg8[%72, %c0_60, %c0_61], %75 {strides = array<i32>} : memref<8x2x32xf32, #tpu.memory_space<vmem>>, vector<1x2x32xf32>,
    %c1_i32 = arith.constant 1 : i32
    %76 = arith.index_cast %c1_i32 : i32 to index
    %c0_62 = arith.constant 0 : index
    %c0_63 = arith.constant 0 : index
    %77 = vector.load %arg8[%76, %c0_62, %c0_63] : memref<8x2x32xf32, #tpu.memory_space<vmem>>, vector<1x2x32xf32>
    %78 = vector.shape_cast %77 : vector<1x2x32xf32> to vector<2x32xf32>
    %79 = arith.truncf %71 : vector<2x32xf32> to vector<2x32xbf16>
    %cst_64 = arith.constant dense<0.000000e+00> : vector<2x32xf32>
    %80 = tpu.matmul %79, %4, %cst_64 {dimension_numbers = #tpu.dot_dimension_numbers<[1], [0], [0], [1], [0, 0, 1, 1], [], []>} : vector<2x32xbf16>, vector<32x32xbf16>, vector<2x32xf32> -> vector<2x32xf32>
    %81 = arith.addf %78, %80 : vector<2x32xf32>
    %82 = math.tanh %81 : vector<2x32xf32>
    %83 = arith.index_cast %c1_i32 : i32 to index
    %c0_65 = arith.constant 0 : index
    %c0_66 = arith.constant 0 : index
    %84 = vector.load %arg8[%83, %c0_65, %c0_66] : memref<8x2x32xf32, #tpu.memory_space<vmem>>, vector<1x2x32xf32>
    %85 = vector.shape_cast %84 : vector<1x2x32xf32> to vector<2x32xf32>
    %86 = vector.shape_cast %82 : vector<2x32xf32> to vector<1x2x32xf32>
    tpu.vector_store %arg8[%83, %c0_65, %c0_66], %86 {strides = array<i32>} : memref<8x2x32xf32, #tpu.memory_space<vmem>>, vector<1x2x32xf32>,
    %c2_i32 = arith.constant 2 : i32
    %87 = arith.index_cast %c2_i32 : i32 to index
    %c0_67 = arith.constant 0 : index
    %c0_68 = arith.constant 0 : index
    %88 = vector.load %arg8[%87, %c0_67, %c0_68] : memref<8x2x32xf32, #tpu.memory_space<vmem>>, vector<1x2x32xf32>
    %89 = vector.shape_cast %88 : vector<1x2x32xf32> to vector<2x32xf32>
    %90 = arith.truncf %82 : vector<2x32xf32> to vector<2x32xbf16>
    %cst_69 = arith.constant dense<0.000000e+00> : vector<2x32xf32>
    %91 = tpu.matmul %90, %4, %cst_69 {dimension_numbers = #tpu.dot_dimension_numbers<[1], [0], [0], [1], [0, 0, 1, 1], [], []>} : vector<2x32xbf16>, vector<32x32xbf16>, vector<2x32xf32> -> vector<2x32xf32>
    %92 = arith.addf %89, %91 : vector<2x32xf32>
    %93 = math.tanh %92 : vector<2x32xf32>
    %94 = arith.index_cast %c2_i32 : i32 to index
    %c0_70 = arith.constant 0 : index
    %c0_71 = arith.constant 0 : index
    %95 = vector.load %arg8[%94, %c0_70, %c0_71] : memref<8x2x32xf32, #tpu.memory_space<vmem>>, vector<1x2x32xf32>
    %96 = vector.shape_cast %95 : vector<1x2x32xf32> to vector<2x32xf32>
    %97 = vector.shape_cast %93 : vector<2x32xf32> to vector<1x2x32xf32>
    tpu.vector_store %arg8[%94, %c0_70, %c0_71], %97 {strides = array<i32>} : memref<8x2x32xf32, #tpu.memory_space<vmem>>, vector<1x2x32xf32>,
    %c3_i32 = arith.constant 3 : i32
    %98 = arith.index_cast %c3_i32 : i32 to index
    %c0_72 = arith.constant 0 : index
    %c0_73 = arith.constant 0 : index
    %99 = vector.load %arg8[%98, %c0_72, %c0_73] : memref<8x2x32xf32, #tpu.memory_space<vmem>>, vector<1x2x32xf32>
    %100 = vector.shape_cast %99 : vector<1x2x32xf32> to vector<2x32xf32>
    %101 = arith.truncf %93 : vector<2x32xf32> to vector<2x32xbf16>
    %cst_74 = arith.constant dense<0.000000e+00> : vector<2x32xf32>
    %102 = tpu.matmul %101, %4, %cst_74 {dimension_numbers = #tpu.dot_dimension_numbers<[1], [0], [0], [1], [0, 0, 1, 1], [], []>} : vector<2x32xbf16>, vector<32x32xbf16>, vector<2x32xf32> -> vector<2x32xf32>
    %103 = arith.addf %100, %102 : vector<2x32xf32>
    %104 = math.tanh %103 : vector<2x32xf32>
    %105 = arith.index_cast %c3_i32 : i32 to index
    %c0_75 = arith.constant 0 : index
    %c0_76 = arith.constant 0 : index
    %106 = vector.load %arg8[%105, %c0_75, %c0_76] : memref<8x2x32xf32, #tpu.memory_space<vmem>>, vector<1x2x32xf32>
    %107 = vector.shape_cast %106 : vector<1x2x32xf32> to vector<2x32xf32>
    %108 = vector.shape_cast %104 : vector<2x32xf32> to vector<1x2x32xf32>
    tpu.vector_store %arg8[%105, %c0_75, %c0_76], %108 {strides = array<i32>} : memref<8x2x32xf32, #tpu.memory_space<vmem>>, vector<1x2x32xf32>,
    %c4_i32 = arith.constant 4 : i32
    %109 = arith.index_cast %c4_i32 : i32 to index
    %c0_77 = arith.constant 0 : index
    %c0_78 = arith.constant 0 : index
    %110 = vector.load %arg8[%109, %c0_77, %c0_78] : memref<8x2x32xf32, #tpu.memory_space<vmem>>, vector<1x2x32xf32>
    %111 = vector.shape_cast %110 : vector<1x2x32xf32> to vector<2x32xf32>
    %112 = arith.truncf %104 : vector<2x32xf32> to vector<2x32xbf16>
    %cst_79 = arith.constant dense<0.000000e+00> : vector<2x32xf32>
    %113 = tpu.matmul %112, %4, %cst_79 {dimension_numbers = #tpu.dot_dimension_numbers<[1], [0], [0], [1], [0, 0, 1, 1], [], []>} : vector<2x32xbf16>, vector<32x32xbf16>, vector<2x32xf32> -> vector<2x32xf32>
    %114 = arith.addf %111, %113 : vector<2x32xf32>
    %115 = math.tanh %114 : vector<2x32xf32>
    %116 = arith.index_cast %c4_i32 : i32 to index
    %c0_80 = arith.constant 0 : index
    %c0_81 = arith.constant 0 : index
    %117 = vector.load %arg8[%116, %c0_80, %c0_81] : memref<8x2x32xf32, #tpu.memory_space<vmem>>, vector<1x2x32xf32>
    %118 = vector.shape_cast %117 : vector<1x2x32xf32> to vector<2x32xf32>
    %119 = vector.shape_cast %115 : vector<2x32xf32> to vector<1x2x32xf32>
    tpu.vector_store %arg8[%116, %c0_80, %c0_81], %119 {strides = array<i32>} : memref<8x2x32xf32, #tpu.memory_space<vmem>>, vector<1x2x32xf32>,
    %c5_i32 = arith.constant 5 : i32
    %120 = arith.index_cast %c5_i32 : i32 to index
    %c0_82 = arith.constant 0 : index
    %c0_83 = arith.constant 0 : index
    %121 = vector.load %arg8[%120, %c0_82, %c0_83] : memref<8x2x32xf32, #tpu.memory_space<vmem>>, vector<1x2x32xf32>
    %122 = vector.shape_cast %121 : vector<1x2x32xf32> to vector<2x32xf32>
    %123 = arith.truncf %115 : vector<2x32xf32> to vector<2x32xbf16>
    %cst_84 = arith.constant dense<0.000000e+00> : vector<2x32xf32>
    %124 = tpu.matmul %123, %4, %cst_84 {dimension_numbers = #tpu.dot_dimension_numbers<[1], [0], [0], [1], [0, 0, 1, 1], [], []>} : vector<2x32xbf16>, vector<32x32xbf16>, vector<2x32xf32> -> vector<2x32xf32>
    %125 = arith.addf %122, %124 : vector<2x32xf32>
    %126 = math.tanh %125 : vector<2x32xf32>
    %127 = arith.index_cast %c5_i32 : i32 to index
    %c0_85 = arith.constant 0 : index
    %c0_86 = arith.constant 0 : index
    %128 = vector.load %arg8[%127, %c0_85, %c0_86] : memref<8x2x32xf32, #tpu.memory_space<vmem>>, vector<1x2x32xf32>
    %129 = vector.shape_cast %128 : vector<1x2x32xf32> to vector<2x32xf32>
    %130 = vector.shape_cast %126 : vector<2x32xf32> to vector<1x2x32xf32>
    tpu.vector_store %arg8[%127, %c0_85, %c0_86], %130 {strides = array<i32>} : memref<8x2x32xf32, #tpu.memory_space<vmem>>, vector<1x2x32xf32>,
    %c6_i32 = arith.constant 6 : i32
    %131 = arith.index_cast %c6_i32 : i32 to index
    %c0_87 = arith.constant 0 : index
    %c0_88 = arith.constant 0 : index
    %132 = vector.load %arg8[%131, %c0_87, %c0_88] : memref<8x2x32xf32, #tpu.memory_space<vmem>>, vector<1x2x32xf32>
    %133 = vector.shape_cast %132 : vector<1x2x32xf32> to vector<2x32xf32>
    %134 = arith.truncf %126 : vector<2x32xf32> to vector<2x32xbf16>
    %cst_89 = arith.constant dense<0.000000e+00> : vector<2x32xf32>
    %135 = tpu.matmul %134, %4, %cst_89 {dimension_numbers = #tpu.dot_dimension_numbers<[1], [0], [0], [1], [0, 0, 1, 1], [], []>} : vector<2x32xbf16>, vector<32x32xbf16>, vector<2x32xf32> -> vector<2x32xf32>
    %136 = arith.addf %133, %135 : vector<2x32xf32>
    %137 = math.tanh %136 : vector<2x32xf32>
    %138 = arith.index_cast %c6_i32 : i32 to index
    %c0_90 = arith.constant 0 : index
    %c0_91 = arith.constant 0 : index
    %139 = vector.load %arg8[%138, %c0_90, %c0_91] : memref<8x2x32xf32, #tpu.memory_space<vmem>>, vector<1x2x32xf32>
    %140 = vector.shape_cast %139 : vector<1x2x32xf32> to vector<2x32xf32>
    %141 = vector.shape_cast %137 : vector<2x32xf32> to vector<1x2x32xf32>
    tpu.vector_store %arg8[%138, %c0_90, %c0_91], %141 {strides = array<i32>} : memref<8x2x32xf32, #tpu.memory_space<vmem>>, vector<1x2x32xf32>,
    %c7_i32 = arith.constant 7 : i32
    %142 = arith.index_cast %c7_i32 : i32 to index
    %c0_92 = arith.constant 0 : index
    %c0_93 = arith.constant 0 : index
    %143 = vector.load %arg8[%142, %c0_92, %c0_93] : memref<8x2x32xf32, #tpu.memory_space<vmem>>, vector<1x2x32xf32>
    %144 = vector.shape_cast %143 : vector<1x2x32xf32> to vector<2x32xf32>
    %145 = arith.truncf %137 : vector<2x32xf32> to vector<2x32xbf16>
    %cst_94 = arith.constant dense<0.000000e+00> : vector<2x32xf32>
    %146 = tpu.matmul %145, %4, %cst_94 {dimension_numbers = #tpu.dot_dimension_numbers<[1], [0], [0], [1], [0, 0, 1, 1], [], []>} : vector<2x32xbf16>, vector<32x32xbf16>, vector<2x32xf32> -> vector<2x32xf32>
    %147 = arith.addf %144, %146 : vector<2x32xf32>
    %148 = math.tanh %147 : vector<2x32xf32>
    %149 = arith.index_cast %c7_i32 : i32 to index
    %c0_95 = arith.constant 0 : index
    %c0_96 = arith.constant 0 : index
    %150 = vector.load %arg8[%149, %c0_95, %c0_96] : memref<8x2x32xf32, #tpu.memory_space<vmem>>, vector<1x2x32xf32>
    %151 = vector.shape_cast %150 : vector<1x2x32xf32> to vector<2x32xf32>
    %152 = vector.shape_cast %148 : vector<2x32xf32> to vector<1x2x32xf32>
    tpu.vector_store %arg8[%149, %c0_95, %c0_96], %152 {strides = array<i32>} : memref<8x2x32xf32, #tpu.memory_space<vmem>>, vector<1x2x32xf32>,
    %c8_i32 = arith.constant 8 : i32
    %c0_97 = arith.constant 0 : index
    %c0_98 = arith.constant 0 : index
    %153 = vector.load %arg7[%c0_97, %c0_98] : memref<2x32xf32, #tpu.memory_space<vmem>>, vector<2x32xf32>
    tpu.vector_store %arg7[%c0_97, %c0_98], %148 {strides = array<i32>} : memref<2x32xf32, #tpu.memory_space<vmem>>, vector<2x32xf32>,
    %c0_99 = arith.constant 0 : index
    %c0_100 = arith.constant 0 : index
    %c0_101 = arith.constant 0 : index
    %154 = vector.load %arg8[%c0_99, %c0_100, %c0_101] : memref<8x2x32xf32, #tpu.memory_space<vmem>>, vector<1x2x32xf32>
    %155 = vector.shape_cast %154 : vector<1x2x32xf32> to vector<2x32xf32>
    %c0_102 = arith.constant 0 : index
    %c0_103 = arith.constant 0 : index
    %c0_104 = arith.constant 0 : index
    %156 = vector.load %arg6[%c0_102, %c0_103, %c0_104] : memref<2x8x32xf32, #tpu.memory_space<vmem>>, vector<2x1x32xf32>
    %157 = vector.shape_cast %156 : vector<2x1x32xf32> to vector<2x32xf32>
    %158 = vector.shape_cast %155 : vector<2x32xf32> to vector<2x1x32xf32>
    tpu.vector_store %arg6[%c0_102, %c0_103, %c0_104], %158 {strides = array<i32>} : memref<2x8x32xf32, #tpu.memory_space<vmem>>, vector<2x1x32xf32>,
    %c1_105 = arith.constant 1 : index
    %c0_106 = arith.constant 0 : index
    %c0_107 = arith.constant 0 : index
    %159 = vector.load %arg8[%c1_105, %c0_106, %c0_107] : memref<8x2x32xf32, #tpu.memory_space<vmem>>, vector<1x2x32xf32>
    %160 = vector.shape_cast %159 : vector<1x2x32xf32> to vector<2x32xf32>
    %c0_108 = arith.constant 0 : index
    %c1_109 = arith.constant 1 : index
    %c0_110 = arith.constant 0 : index
    %161 = vector.load %arg6[%c0_108, %c1_109, %c0_110] : memref<2x8x32xf32, #tpu.memory_space<vmem>>, vector<2x1x32xf32>
    %162 = vector.shape_cast %161 : vector<2x1x32xf32> to vector<2x32xf32>
    %163 = vector.shape_cast %160 : vector<2x32xf32> to vector<2x1x32xf32>
    tpu.vector_store %arg6[%c0_108, %c1_109, %c0_110], %163 {strides = array<i32>} : memref<2x8x32xf32, #tpu.memory_space<vmem>>, vector<2x1x32xf32>,
    %c2_111 = arith.constant 2 : index
    %c0_112 = arith.constant 0 : index
    %c0_113 = arith.constant 0 : index
    %164 = vector.load %arg8[%c2_111, %c0_112, %c0_113] : memref<8x2x32xf32, #tpu.memory_space<vmem>>, vector<1x2x32xf32>
    %165 = vector.shape_cast %164 : vector<1x2x32xf32> to vector<2x32xf32>
    %c0_114 = arith.constant 0 : index
    %c2_115 = arith.constant 2 : index
    %c0_116 = arith.constant 0 : index
    %166 = vector.load %arg6[%c0_114, %c2_115, %c0_116] : memref<2x8x32xf32, #tpu.memory_space<vmem>>, vector<2x1x32xf32>
    %167 = vector.shape_cast %166 : vector<2x1x32xf32> to vector<2x32xf32>
    %168 = vector.shape_cast %165 : vector<2x32xf32> to vector<2x1x32xf32>
    tpu.vector_store %arg6[%c0_114, %c2_115, %c0_116], %168 {strides = array<i32>} : memref<2x8x32xf32, #tpu.memory_space<vmem>>, vector<2x1x32xf32>,
    %c3_117 = arith.constant 3 : index
    %c0_118 = arith.constant 0 : index
    %c0_119 = arith.constant 0 : index
    %169 = vector.load %arg8[%c3_117, %c0_118, %c0_119] : memref<8x2x32xf32, #tpu.memory_space<vmem>>, vector<1x2x32xf32>
    %170 = vector.shape_cast %169 : vector<1x2x32xf32> to vector<2x32xf32>
    %c0_120 = arith.constant 0 : index
    %c3_121 = arith.constant 3 : index
    %c0_122 = arith.constant 0 : index
    %171 = vector.load %arg6[%c0_120, %c3_121, %c0_122] : memref<2x8x32xf32, #tpu.memory_space<vmem>>, vector<2x1x32xf32>
    %172 = vector.shape_cast %171 : vector<2x1x32xf32> to vector<2x32xf32>
    %173 = vector.shape_cast %170 : vector<2x32xf32> to vector<2x1x32xf32>
    tpu.vector_store %arg6[%c0_120, %c3_121, %c0_122], %173 {strides = array<i32>} : memref<2x8x32xf32, #tpu.memory_space<vmem>>, vector<2x1x32xf32>,
    %c4_123 = arith.constant 4 : index
    %c0_124 = arith.constant 0 : index
    %c0_125 = arith.constant 0 : index
    %174 = vector.load %arg8[%c4_123, %c0_124, %c0_125] : memref<8x2x32xf32, #tpu.memory_space<vmem>>, vector<1x2x32xf32>
    %175 = vector.shape_cast %174 : vector<1x2x32xf32> to vector<2x32xf32>
    %c0_126 = arith.constant 0 : index
    %c4_127 = arith.constant 4 : index
    %c0_128 = arith.constant 0 : index
    %176 = vector.load %arg6[%c0_126, %c4_127, %c0_128] : memref<2x8x32xf32, #tpu.memory_space<vmem>>, vector<2x1x32xf32>
    %177 = vector.shape_cast %176 : vector<2x1x32xf32> to vector<2x32xf32>
    %178 = vector.shape_cast %175 : vector<2x32xf32> to vector<2x1x32xf32>
    tpu.vector_store %arg6[%c0_126, %c4_127, %c0_128], %178 {strides = array<i32>} : memref<2x8x32xf32, #tpu.memory_space<vmem>>, vector<2x1x32xf32>,
    %c5_129 = arith.constant 5 : index
    %c0_130 = arith.constant 0 : index
    %c0_131 = arith.constant 0 : index
    %179 = vector.load %arg8[%c5_129, %c0_130, %c0_131] : memref<8x2x32xf32, #tpu.memory_space<vmem>>, vector<1x2x32xf32>
    %180 = vector.shape_cast %179 : vector<1x2x32xf32> to vector<2x32xf32>
    %c0_132 = arith.constant 0 : index
    %c5_133 = arith.constant 5 : index
    %c0_134 = arith.constant 0 : index
    %181 = vector.load %arg6[%c0_132, %c5_133, %c0_134] : memref<2x8x32xf32, #tpu.memory_space<vmem>>, vector<2x1x32xf32>
    %182 = vector.shape_cast %181 : vector<2x1x32xf32> to vector<2x32xf32>
    %183 = vector.shape_cast %180 : vector<2x32xf32> to vector<2x1x32xf32>
    tpu.vector_store %arg6[%c0_132, %c5_133, %c0_134], %183 {strides = array<i32>} : memref<2x8x32xf32, #tpu.memory_space<vmem>>, vector<2x1x32xf32>,
    %c6_135 = arith.constant 6 : index
    %c0_136 = arith.constant 0 : index
    %c0_137 = arith.constant 0 : index
    %184 = vector.load %arg8[%c6_135, %c0_136, %c0_137] : memref<8x2x32xf32, #tpu.memory_space<vmem>>, vector<1x2x32xf32>
    %185 = vector.shape_cast %184 : vector<1x2x32xf32> to vector<2x32xf32>
    %c0_138 = arith.constant 0 : index
    %c6_139 = arith.constant 6 : index
    %c0_140 = arith.constant 0 : index
    %186 = vector.load %arg6[%c0_138, %c6_139, %c0_140] : memref<2x8x32xf32, #tpu.memory_space<vmem>>, vector<2x1x32xf32>
    %187 = vector.shape_cast %186 : vector<2x1x32xf32> to vector<2x32xf32>
    %188 = vector.shape_cast %185 : vector<2x32xf32> to vector<2x1x32xf32>
    tpu.vector_store %arg6[%c0_138, %c6_139, %c0_140], %188 {strides = array<i32>} : memref<2x8x32xf32, #tpu.memory_space<vmem>>, vector<2x1x32xf32>,
    %c7_141 = arith.constant 7 : index
    %c0_142 = arith.constant 0 : index
    %c0_143 = arith.constant 0 : index
    %189 = vector.load %arg8[%c7_141, %c0_142, %c0_143] : memref<8x2x32xf32, #tpu.memory_space<vmem>>, vector<1x2x32xf32>
    %190 = vector.shape_cast %189 : vector<1x2x32xf32> to vector<2x32xf32>
    %c0_144 = arith.constant 0 : index
    %c7_145 = arith.constant 7 : index
    %c0_146 = arith.constant 0 : index
    %191 = vector.load %arg6[%c0_144, %c7_145, %c0_146] : memref<2x8x32xf32, #tpu.memory_space<vmem>>, vector<2x1x32xf32>
    %192 = vector.shape_cast %191 : vector<2x1x32xf32> to vector<2x32xf32>
    %193 = vector.shape_cast %190 : vector<2x32xf32> to vector<2x1x32xf32>
    tpu.vector_store %arg6[%c0_144, %c7_145, %c0_146], %193 {strides = array<i32>} : memref<2x8x32xf32, #tpu.memory_space<vmem>>, vector<2x1x32xf32>,
    return
  }
  func.func @transform_0(%arg0: i32, %arg1: i32) -> (i32, i32, i32) {
    %c0_i32 = arith.constant 0 : i32
    %c0_i32_0 = arith.constant 0 : i32
    return %arg1, %arg0, %c0_i32 : i32, i32, i32
  }
  func.func @transform_1(%arg0: i32, %arg1: i32) -> (i32, i32) {
    %c0_i32 = arith.constant 0 : i32
    %c0_i32_0 = arith.constant 0 : i32
    %c0_i32_1 = arith.constant 0 : i32
    return %c0_i32, %c0_i32_0 : i32, i32
  }
  func.func @transform_2(%arg0: i32, %arg1: i32) -> (i32, i32) {
    %c0_i32 = arith.constant 0 : i32
    %c0_i32_0 = arith.constant 0 : i32
    %c0_i32_1 = arith.constant 0 : i32
    return %c0_i32, %c0_i32_0 : i32, i32
  }
  func.func @transform_3(%arg0: i32, %arg1: i32) -> (i32, i32) {
    %c0_i32 = arith.constant 0 : i32
    %c0_i32_0 = arith.constant 0 : i32
    %c0_i32_1 = arith.constant 0 : i32
    return %c0_i32, %c0_i32_0 : i32, i32
  }
  func.func @transform_4(%arg0: i32, %arg1: i32) -> (i32, i32, i32) {
    %c0_i32 = arith.constant 0 : i32
    %c0_i32_0 = arith.constant 0 : i32
    return %arg0, %arg1, %c0_i32 : i32, i32, i32
  }
}

</mosaic_0001>

<llo_original>
// kernel: encoder_forward.1
$region0: #{encoder_forward.1}
  #allocation0 [shape = 'u32[]', space=smem, size = 0x4, offset = 0x4, fixed_abs, tag = 'smem constant byte address 0x4 - core index']
  #allocation1 [shape = 'u32[144,128]{1,0:T(1,128)}', space=vmem, size = 0x12000, scoped, tag = 'internal scratch']
  #allocation2 [shape = 'f32[2,32]{1,0:T(2,128)}', space=vmem, size = 0x400, scoped, tag = 'scratch operand']
  #allocation3 [shape = 'f32[8,2,32]{2,1,0:T(2,128)}', space=vmem, size = 0x2000, scoped, tag = 'scratch operand']
  %s0 = inlined_call_operand.vmem [shape: bf16[8,2,32], index: 0, kind: input, shape index: {}]
  %s1 = inlined_call_operand.vmem [shape: bf16[32,32], index: 1, kind: input, shape index: {}]
  %s2 = inlined_call_operand.vmem [shape: bf16[32,32], index: 2, kind: input, shape index: {}]
  %s3 = inlined_call_operand.vmem [shape: f32[1,32], index: 3, kind: input, shape index: {}]
  %s4 = inlined_call_operand.vmem [shape: f32[2,8,32], index: 4, kind: output, shape index: {}]
  %s5 = sld [smem:[#allocation0]]
  $region30: #{encoder_forward.1} parent=0
    _
  %s7 = ssub.s32 1, %s5
  %s8 = scalar_select 0, %s7, %s5
  // Predicated region
  $region2: #{encoder_forward.1} parent=0 // pred_check
    _
  $region3: #{encoder_forward.1} parent=0 // pred_check_branch
    %10 = sbr.rel (0) target = $region5
  $region4: #{encoder_forward.1} parent=0 // pred_region
    _
  $region5: #{encoder_forward.1} parent=0 // pred_fallthru
    _
  // Predicated region
  $region6: #{encoder_forward.1} parent=0 // pred_check
    _
  $region7: #{encoder_forward.1} parent=0 // pred_check_branch
    %12 = sbr.rel (0) target = $region9
  $region8: #{encoder_forward.1} parent=0 // pred_region
    _
  $region9: #{encoder_forward.1} parent=0 // pred_fallthru
    _
  // Predicated region
  $region10: #{encoder_forward.1} parent=0 // pred_check
    _
  $region11: #{encoder_forward.1} parent=0 // pred_check_branch
    %14 = sbr.rel (0) target = $region13
  $region12: #{encoder_forward.1} parent=0 // pred_region
    _
  $region13: #{encoder_forward.1} parent=0 // pred_fallthru
    _
  // Predicated region
  $region14: #{encoder_forward.1} parent=0 // pred_check
    _
  $region15: #{encoder_forward.1} parent=0 // pred_check_branch
    %16 = sbr.rel (0) target = $region17
  $region16: #{encoder_forward.1} parent=0 // pred_region
    _
  $region17: #{encoder_forward.1} parent=0 // pred_fallthru
    _
  %p18 = scmp.eq.s32.totalorder 0, 0
  // Predicated region
  $region18: #{encoder_forward.1} parent=0 // pred_check
    %p19 = pneg %p18
  $region19: #{encoder_forward.1} parent=0 // pred_check_branch
    %21 = sbr.rel (%p19) target = $region21
  $region20: #{encoder_forward.1} parent=0 // pred_region
    %vm22 = vcmask 254976
    %23 = vst.msk [vmem:[#allocation2] sm:$0x3] %vm22, 0.0
  $region21: #{encoder_forward.1} parent=0 // pred_fallthru
    _
  %v24 = vld [vmem:[%s1] sm:$0xf]
  %v25 = vld [vmem:[%s1 + $0x4] sm:$0xf]
  %v26 = vld [vmem:[%s1 + $0x8] sm:$0xf]
  %v27 = vld [vmem:[%s1 + $0xc] sm:$0xf]
  %v28 = vld [vmem:[%s2] sm:$0xf]
  %v29 = vld [vmem:[%s2 + $0x4] sm:$0xf]
  %v30 = vld [vmem:[%s2 + $0x8] sm:$0xf]
  %v31 = vld [vmem:[%s2 + $0xc] sm:$0xf]
  %v32 = vld [vmem:[%s3] sm:$0x1]
  %v34 = vlaneseq
  %v35 = vshrl.u32 %v34, 7
  %v36 = vsub.s32 0, %v35
  %v37 = vrot.slane %v32, %v36
  %v39 = vld [vmem:[%s0] sm:$0x1]
  %v44 = vunpack.c.l.b16 %v24
  %v45 = vunpack.c.l.b16 %v25
  %v46 = vunpack.c.l.b16 %v26
  %v47 = vunpack.c.l.b16 %v27
  %v48 = vpack.c.b16 %v45, %v44
  %v49 = vpack.c.b16 %v47, %v46
  %vm52 = vcmask 261120
  %v54 = vsel %vm52, %v39, 0
  %56 = vmatprep.subr.bf16.mxu0 0
  %57 = vmatpush1.bf16.msra.mxu0 %v48
  %58 = vmatprep.subr.bf16.mxu0 0
  %59 = vmatpush1.bf16.msra.mxu0 %v49
  %60 = vmatprep.subr.bf16.mxu0 0
  %61 = vmatpush1.bf16.msra.mxu0 0
  %62 = vmatprep.subr.bf16.mxu0 0
  %63 = vmatpush1.bf16.msra.mxu0 0
  %64 = vmatprep.subr.bf16.mxu0 0
  %65 = vmatpush1.bf16.msra.mxu0 0
  %66 = vmatprep.subr.bf16.mxu0 0
  %67 = vmatpush1.bf16.msra.mxu0 0
  %68 = vmatprep.subr.bf16.mxu0 0
  %69 = vmatpush1.bf16.msra.mxu0 0
  %70 = vmatprep.subr.bf16.mxu0 0
  %71 = vmatpush1.bf16.msra.mxu0 0
  %72 = vmatprep.subr.bf16.mxu0 0
  %73 = vmatpush1.bf16.msra.mxu0 0
  %74 = vmatprep.subr.bf16.mxu0 0
  %75 = vmatpush1.bf16.msra.mxu0 0
  %76 = vmatprep.subr.bf16.mxu0 0
  %77 = vmatpush1.bf16.msra.mxu0 0
  %78 = vmatprep.subr.bf16.mxu0 0
  %79 = vmatpush1.bf16.msra.mxu0 0
  %80 = vmatprep.subr.bf16.mxu0 0
  %81 = vmatpush1.bf16.msra.mxu0 0
  %82 = vmatprep.subr.bf16.mxu0 0
  %83 = vmatpush1.bf16.msra.mxu0 0
  %84 = vmatprep.subr.bf16.mxu0 0
  %85 = vmatpush1.bf16.msra.mxu0 0
  %86 = vmatprep.subr.bf16.mxu0 0
  %87 = vmatpush1.bf16.msra.mxu0 0
  %88 = vmatprep.mubr.bf16.mxu0 0
  %89 = vmatmul.mubr.bf16.gmra.mrb[0].mxu0 %v54
  %v90 = vpop.f32.mrb[0].mxu0
  %v91 = vadd.f32 %v37, %v90
  %v92 = vpop.f32.mrb[0].mxu0
  %v93 = vpop.f32.mrb[0].mxu0
  %v94 = vpop.f32.mrb[0].mxu0
  %95 = vdwg.mxu0
  %vm96 = vcmask 254976
  %97 = vst.msk [vmem:[#allocation3] sm:$0x3] %vm96, %v91
  %s98 = scalar_lea.vmem %s0, 1
  %v99 = vld [vmem:[%s98] sm:$0x1]
  %v101 = vsel %vm52, %v99, 0
  %103 = vmatprep.subr.bf16.mxu0 0
  %104 = vmatpush1.bf16.msra.mxu0 %v48
  %105 = vmatprep.subr.bf16.mxu0 0
  %106 = vmatpush1.bf16.msra.mxu0 %v49
  %107 = vmatprep.subr.bf16.mxu0 0
  %108 = vmatpush1.bf16.msra.mxu0 0
  %109 = vmatprep.subr.bf16.mxu0 0
  %110 = vmatpush1.bf16.msra.mxu0 0
  %111 = vmatprep.subr.bf16.mxu0 0
  %112 = vmatpush1.bf16.msra.mxu0 0
  %113 = vmatprep.subr.bf16.mxu0 0
  %114 = vmatpush1.bf16.msra.mxu0 0
  %115 = vmatprep.subr.bf16.mxu0 0
  %116 = vmatpush1.bf16.msra.mxu0 0
  %117 = vmatprep.subr.bf16.mxu0 0
  %118 = vmatpush1.bf16.msra.mxu0 0
  %119 = vmatprep.subr.bf16.mxu0 0
  %120 = vmatpush1.bf16.msra.mxu0 0
  %121 = vmatprep.subr.bf16.mxu0 0
  %122 = vmatpush1.bf16.msra.mxu0 0
  %123 = vmatprep.subr.bf16.mxu0 0
  %124 = vmatpush1.bf16.msra.mxu0 0
  %125 = vmatprep.subr.bf16.mxu0 0
  %126 = vmatpush1.bf16.msra.mxu0 0
  %127 = vmatprep.subr.bf16.mxu0 0
  %128 = vmatpush1.bf16.msra.mxu0 0
  %129 = vmatprep.subr.bf16.mxu0 0
  %130 = vmatpush1.bf16.msra.mxu0 0
  %131 = vmatprep.subr.bf16.mxu0 0
  %132 = vmatpush1.bf16.msra.mxu0 0
  %133 = vmatprep.subr.bf16.mxu0 0
  %134 = vmatpush1.bf16.msra.mxu0 0
  %135 = vmatprep.mubr.bf16.mxu0 0
  %136 = vmatmul.mubr.bf16.gmra.mrb[0].mxu0 %v101
  %v137 = vpop.f32.mrb[0].mxu0
  %v138 = vadd.f32 %v37, %v137
  %v139 = vpop.f32.mrb[0].mxu0
  %v140 = vpop.f32.mrb[0].mxu0
  %v141 = vpop.f32.mrb[0].mxu0
  %142 = vdwg.mxu0
  %s143 = scalar_lea.vmem [#allocation3], 2
  %144 = vst.msk [vmem:[%s143] sm:$0x3] %vm96, %v138
  %s145 = scalar_lea.vmem %s0, 2
  %v146 = vld [vmem:[%s145] sm:$0x1]
  %v148 = vsel %vm52, %v146, 0
  %150 = vmatprep.subr.bf16.mxu0 0
  %151 = vmatpush1.bf16.msra.mxu0 %v48
  %152 = vmatprep.subr.bf16.mxu0 0
  %153 = vmatpush1.bf16.msra.mxu0 %v49
  %154 = vmatprep.subr.bf16.mxu0 0
  %155 = vmatpush1.bf16.msra.mxu0 0
  %156 = vmatprep.subr.bf16.mxu0 0
  %157 = vmatpush1.bf16.msra.mxu0 0
  %158 = vmatprep.subr.bf16.mxu0 0
  %159 = vmatpush1.bf16.msra.mxu0 0
  %160 = vmatprep.subr.bf16.mxu0 0
  %161 = vmatpush1.bf16.msra.mxu0 0
  %162 = vmatprep.subr.bf16.mxu0 0
  %163 = vmatpush1.bf16.msra.mxu0 0
  %164 = vmatprep.subr.bf16.mxu0 0
  %165 = vmatpush1.bf16.msra.mxu0 0
  %166 = vmatprep.subr.bf16.mxu0 0
  %167 = vmatpush1.bf16.msra.mxu0 0
  %168 = vmatprep.subr.bf16.mxu0 0
  %169 = vmatpush1.bf16.msra.mxu0 0
  %170 = vmatprep.subr.bf16.mxu0 0
  %171 = vmatpush1.bf16.msra.mxu0 0
  %172 = vmatprep.subr.bf16.mxu0 0
  %173 = vmatpush1.bf16.msra.mxu0 0
  %174 = vmatprep.subr.bf16.mxu0 0
  %175 = vmatpush1.bf16.msra.mxu0 0
  %176 = vmatprep.subr.bf16.mxu0 0
  %177 = vmatpush1.bf16.msra.mxu0 0
  %178 = vmatprep.subr.bf16.mxu0 0
  %179 = vmatpush1.bf16.msra.mxu0 0
  %180 = vmatprep.subr.bf16.mxu0 0
  %181 = vmatpush1.bf16.msra.mxu0 0
  %182 = vmatprep.mubr.bf16.mxu0 0
  %183 = vmatmul.mubr.bf16.gmra.mrb[0].mxu0 %v148
  %v184 = vpop.f32.mrb[0].mxu0
  %v185 = vadd.f32 %v37, %v184
  %v186 = vpop.f32.mrb[0].mxu0
  %v187 = vpop.f32.mrb[0].mxu0
  %v188 = vpop.f32.mrb[0].mxu0
  %189 = vdwg.mxu0
  %s190 = scalar_lea.vmem [#allocation3], 4
  %191 = vst.msk [vmem:[%s190] sm:$0x3] %vm96, %v185
  %s192 = scalar_lea.vmem %s0, 3
  %v193 = vld [vmem:[%s192] sm:$0x1]
  %v195 = vsel %vm52, %v193, 0
  %197 = vmatprep.subr.bf16.mxu0 0
  %198 = vmatpush1.bf16.msra.mxu0 %v48
  %199 = vmatprep.subr.bf16.mxu0 0
  %200 = vmatpush1.bf16.msra.mxu0 %v49
  %201 = vmatprep.subr.bf16.mxu0 0
  %202 = vmatpush1.bf16.msra.mxu0 0
  %203 = vmatprep.subr.bf16.mxu0 0
  %204 = vmatpush1.bf16.msra.mxu0 0
  %205 = vmatprep.subr.bf16.mxu0 0
  %206 = vmatpush1.bf16.msra.mxu0 0
  %207 = vmatprep.subr.bf16.mxu0 0
  %208 = vmatpush1.bf16.msra.mxu0 0
  %209 = vmatprep.subr.bf16.mxu0 0
  %210 = vmatpush1.bf16.msra.mxu0 0
  %211 = vmatprep.subr.bf16.mxu0 0
  %212 = vmatpush1.bf16.msra.mxu0 0
  %213 = vmatprep.subr.bf16.mxu0 0
  %214 = vmatpush1.bf16.msra.mxu0 0
  %215 = vmatprep.subr.bf16.mxu0 0
  %216 = vmatpush1.bf16.msra.mxu0 0
  %217 = vmatprep.subr.bf16.mxu0 0
  %218 = vmatpush1.bf16.msra.mxu0 0
  %219 = vmatprep.subr.bf16.mxu0 0
  %220 = vmatpush1.bf16.msra.mxu0 0
  %221 = vmatprep.subr.bf16.mxu0 0
  %222 = vmatpush1.bf16.msra.mxu0 0
  %223 = vmatprep.subr.bf16.mxu0 0
  %224 = vmatpush1.bf16.msra.mxu0 0
  %225 = vmatprep.subr.bf16.mxu0 0
  %226 = vmatpush1.bf16.msra.mxu0 0
  %227 = vmatprep.subr.bf16.mxu0 0
  %228 = vmatpush1.bf16.msra.mxu0 0
  %229 = vmatprep.mubr.bf16.mxu0 0
  %230 = vmatmul.mubr.bf16.gmra.mrb[0].mxu0 %v195
  %v231 = vpop.f32.mrb[0].mxu0
  %v232 = vadd.f32 %v37, %v231
  %v233 = vpop.f32.mrb[0].mxu0
  %v234 = vpop.f32.mrb[0].mxu0
  %v235 = vpop.f32.mrb[0].mxu0
  %236 = vdwg.mxu0
  %s237 = scalar_lea.vmem [#allocation3], 6
  %238 = vst.msk [vmem:[%s237] sm:$0x3] %vm96, %v232
  %s239 = scalar_lea.vmem %s0, 4
  %v240 = vld [vmem:[%s239] sm:$0x1]
  %v242 = vsel %vm52, %v240, 0
  %244 = vmatprep.subr.bf16.mxu0 0
  %245 = vmatpush1.bf16.msra.mxu0 %v48
  %246 = vmatprep.subr.bf16.mxu0 0
  %247 = vmatpush1.bf16.msra.mxu0 %v49
  %248 = vmatprep.subr.bf16.mxu0 0
  %249 = vmatpush1.bf16.msra.mxu0 0
  %250 = vmatprep.subr.bf16.mxu0 0
  %251 = vmatpush1.bf16.msra.mxu0 0
  %252 = vmatprep.subr.bf16.mxu0 0
  %253 = vmatpush1.bf16.msra.mxu0 0
  %254 = vmatprep.subr.bf16.mxu0 0
  %255 = vmatpush1.bf16.msra.mxu0 0
  %256 = vmatprep.subr.bf16.mxu0 0
  %257 = vmatpush1.bf16.msra.mxu0 0
  %258 = vmatprep.subr.bf16.mxu0 0
  %259 = vmatpush1.bf16.msra.mxu0 0
  %260 = vmatprep.subr.bf16.mxu0 0
  %261 = vmatpush1.bf16.msra.mxu0 0
  %262 = vmatprep.subr.bf16.mxu0 0
  %263 = vmatpush1.bf16.msra.mxu0 0
  %264 = vmatprep.subr.bf16.mxu0 0
  %265 = vmatpush1.bf16.msra.mxu0 0
  %266 = vmatprep.subr.bf16.mxu0 0
  %267 = vmatpush1.bf16.msra.mxu0 0
  %268 = vmatprep.subr.bf16.mxu0 0
  %269 = vmatpush1.bf16.msra.mxu0 0
  %270 = vmatprep.subr.bf16.mxu0 0
  %271 = vmatpush1.bf16.msra.mxu0 0
  %272 = vmatprep.subr.bf16.mxu0 0
  %273 = vmatpush1.bf16.msra.mxu0 0
  %274 = vmatprep.subr.bf16.mxu0 0
  %275 = vmatpush1.bf16.msra.mxu0 0
  %276 = vmatprep.mubr.bf16.mxu0 0
  %277 = vmatmul.mubr.bf16.gmra.mrb[0].mxu0 %v242
  %v278 = vpop.f32.mrb[0].mxu0
  %v279 = vadd.f32 %v37, %v278
  %v280 = vpop.f32.mrb[0].mxu0
  %v281 = vpop.f32.mrb[0].mxu0
  %v282 = vpop.f32.mrb[0].mxu0
  %283 = vdwg.mxu0
  %s284 = scalar_lea.vmem [#allocation3], 8
  %285 = vst.msk [vmem:[%s284] sm:$0x3] %vm96, %v279
  %s286 = scalar_lea.vmem %s0, 5
  %v287 = vld [vmem:[%s286] sm:$0x1]
  %v289 = vsel %vm52, %v287, 0
  %291 = vmatprep.subr.bf16.mxu0 0
  %292 = vmatpush1.bf16.msra.mxu0 %v48
  %293 = vmatprep.subr.bf16.mxu0 0
  %294 = vmatpush1.bf16.msra.mxu0 %v49
  %295 = vmatprep.subr.bf16.mxu0 0
  %296 = vmatpush1.bf16.msra.mxu0 0
  %297 = vmatprep.subr.bf16.mxu0 0
  %298 = vmatpush1.bf16.msra.mxu0 0
  %299 = vmatprep.subr.bf16.mxu0 0
  %300 = vmatpush1.bf16.msra.mxu0 0
  %301 = vmatprep.subr.bf16.mxu0 0
  %302 = vmatpush1.bf16.msra.mxu0 0
  %303 = vmatprep.subr.bf16.mxu0 0
  %304 = vmatpush1.bf16.msra.mxu0 0
  %305 = vmatprep.subr.bf16.mxu0 0
  %306 = vmatpush1.bf16.msra.mxu0 0
  %307 = vmatprep.subr.bf16.mxu0 0
  %308 = vmatpush1.bf16.msra.mxu0 0
  %309 = vmatprep.subr.bf16.mxu0 0
  %310 = vmatpush1.bf16.msra.mxu0 0
  %311 = vmatprep.subr.bf16.mxu0 0
  %312 = vmatpush1.bf16.msra.mxu0 0
  %313 = vmatprep.subr.bf16.mxu0 0
  %314 = vmatpush1.bf16.msra.mxu0 0
  %315 = vmatprep.subr.bf16.mxu0 0
  %316 = vmatpush1.bf16.msra.mxu0 0
  %317 = vmatprep.subr.bf16.mxu0 0
  %318 = vmatpush1.bf16.msra.mxu0 0
  %319 = vmatprep.subr.bf16.mxu0 0
  %320 = vmatpush1.bf16.msra.mxu0 0
  %321 = vmatprep.subr.bf16.mxu0 0
  %322 = vmatpush1.bf16.msra.mxu0 0
  %323 = vmatprep.mubr.bf16.mxu0 0
  %324 = vmatmul.mubr.bf16.gmra.mrb[0].mxu0 %v289
  %v325 = vpop.f32.mrb[0].mxu0
  %v326 = vadd.f32 %v37, %v325
  %v327 = vpop.f32.mrb[0].mxu0
  %v328 = vpop.f32.mrb[0].mxu0
  %v329 = vpop.f32.mrb[0].mxu0
  %330 = vdwg.mxu0
  %s331 = scalar_lea.vmem [#allocation3], 10
  %332 = vst.msk [vmem:[%s331] sm:$0x3] %vm96, %v326
  %s333 = scalar_lea.vmem %s0, 6
  %v334 = vld [vmem:[%s333] sm:$0x1]
  %v336 = vsel %vm52, %v334, 0
  %338 = vmatprep.subr.bf16.mxu0 0
  %339 = vmatpush1.bf16.msra.mxu0 %v48
  %340 = vmatprep.subr.bf16.mxu0 0
  %341 = vmatpush1.bf16.msra.mxu0 %v49
  %342 = vmatprep.subr.bf16.mxu0 0
  %343 = vmatpush1.bf16.msra.mxu0 0
  %344 = vmatprep.subr.bf16.mxu0 0
  %345 = vmatpush1.bf16.msra.mxu0 0
  %346 = vmatprep.subr.bf16.mxu0 0
  %347 = vmatpush1.bf16.msra.mxu0 0
  %348 = vmatprep.subr.bf16.mxu0 0
  %349 = vmatpush1.bf16.msra.mxu0 0
  %350 = vmatprep.subr.bf16.mxu0 0
  %351 = vmatpush1.bf16.msra.mxu0 0
  %352 = vmatprep.subr.bf16.mxu0 0
  %353 = vmatpush1.bf16.msra.mxu0 0
  %354 = vmatprep.subr.bf16.mxu0 0
  %355 = vmatpush1.bf16.msra.mxu0 0
  %356 = vmatprep.subr.bf16.mxu0 0
  %357 = vmatpush1.bf16.msra.mxu0 0
  %358 = vmatprep.subr.bf16.mxu0 0
  %359 = vmatpush1.bf16.msra.mxu0 0
  %360 = vmatprep.subr.bf16.mxu0 0
  %361 = vmatpush1.bf16.msra.mxu0 0
  %362 = vmatprep.subr.bf16.mxu0 0
  %363 = vmatpush1.bf16.msra.mxu0 0
  %364 = vmatprep.subr.bf16.mxu0 0
  %365 = vmatpush1.bf16.msra.mxu0 0
  %366 = vmatprep.subr.bf16.mxu0 0
  %367 = vmatpush1.bf16.msra.mxu0 0
  %368 = vmatprep.subr.bf16.mxu0 0
  %369 = vmatpush1.bf16.msra.mxu0 0
  %370 = vmatprep.mubr.bf16.mxu0 0
  %371 = vmatmul.mubr.bf16.gmra.mrb[0].mxu0 %v336
  %v372 = vpop.f32.mrb[0].mxu0
  %v373 = vadd.f32 %v37, %v372
  %v374 = vpop.f32.mrb[0].mxu0
  %v375 = vpop.f32.mrb[0].mxu0
  %v376 = vpop.f32.mrb[0].mxu0
  %377 = vdwg.mxu0
  %s378 = scalar_lea.vmem [#allocation3], 12
  %379 = vst.msk [vmem:[%s378] sm:$0x3] %vm96, %v373
  %s380 = scalar_lea.vmem %s0, 7
  %v381 = vld [vmem:[%s380] sm:$0x1]
  %v383 = vsel %vm52, %v381, 0
  %385 = vmatprep.subr.bf16.mxu0 0
  %386 = vmatpush1.bf16.msra.mxu0 %v48
  %387 = vmatprep.subr.bf16.mxu0 0
  %388 = vmatpush1.bf16.msra.mxu0 %v49
  %389 = vmatprep.subr.bf16.mxu0 0
  %390 = vmatpush1.bf16.msra.mxu0 0
  %391 = vmatprep.subr.bf16.mxu0 0
  %392 = vmatpush1.bf16.msra.mxu0 0
  %393 = vmatprep.subr.bf16.mxu0 0
  %394 = vmatpush1.bf16.msra.mxu0 0
  %395 = vmatprep.subr.bf16.mxu0 0
  %396 = vmatpush1.bf16.msra.mxu0 0
  %397 = vmatprep.subr.bf16.mxu0 0
  %398 = vmatpush1.bf16.msra.mxu0 0
  %399 = vmatprep.subr.bf16.mxu0 0
  %400 = vmatpush1.bf16.msra.mxu0 0
  %401 = vmatprep.subr.bf16.mxu0 0
  %402 = vmatpush1.bf16.msra.mxu0 0
  %403 = vmatprep.subr.bf16.mxu0 0
  %404 = vmatpush1.bf16.msra.mxu0 0
  %405 = vmatprep.subr.bf16.mxu0 0
  %406 = vmatpush1.bf16.msra.mxu0 0
  %407 = vmatprep.subr.bf16.mxu0 0
  %408 = vmatpush1.bf16.msra.mxu0 0
  %409 = vmatprep.subr.bf16.mxu0 0
  %410 = vmatpush1.bf16.msra.mxu0 0
  %411 = vmatprep.subr.bf16.mxu0 0
  %412 = vmatpush1.bf16.msra.mxu0 0
  %413 = vmatprep.subr.bf16.mxu0 0
  %414 = vmatpush1.bf16.msra.mxu0 0
  %415 = vmatprep.subr.bf16.mxu0 0
  %416 = vmatpush1.bf16.msra.mxu0 0
  %417 = vmatprep.mubr.bf16.mxu0 0
  %418 = vmatmul.mubr.bf16.gmra.mrb[0].mxu0 %v383
  %v419 = vpop.f32.mrb[0].mxu0
  %v420 = vadd.f32 %v37, %v419
  %v421 = vpop.f32.mrb[0].mxu0
  %v422 = vpop.f32.mrb[0].mxu0
  %v423 = vpop.f32.mrb[0].mxu0
  %424 = vdwg.mxu0
  %s425 = scalar_lea.vmem [#allocation3], 14
  %426 = vst.msk [vmem:[%s425] sm:$0x3] %vm96, %v420
  %v427 = vld [vmem:[#allocation2] sm:$0x3]
  %v428 = vld [vmem:[#allocation3] sm:$0x3]
  %v429 = vpack.c.bf16 %v427, %v427
  %v434 = vunpack.c.l.b16 %v28
  %v435 = vunpack.c.l.b16 %v29
  %v436 = vunpack.c.l.b16 %v30
  %v437 = vunpack.c.l.b16 %v31
  %v438 = vpack.c.b16 %v435, %v434
  %v439 = vpack.c.b16 %v437, %v436
  %v443 = vsel %vm52, %v429, 0
  %445 = vmatprep.subr.bf16.mxu0 0
  %446 = vmatpush1.bf16.msra.mxu0 %v438
  %447 = vmatprep.subr.bf16.mxu0 0
  %448 = vmatpush1.bf16.msra.mxu0 %v439
  %449 = vmatprep.subr.bf16.mxu0 0
  %450 = vmatpush1.bf16.msra.mxu0 0
  %451 = vmatprep.subr.bf16.mxu0 0
  %452 = vmatpush1.bf16.msra.mxu0 0
  %453 = vmatprep.subr.bf16.mxu0 0
  %454 = vmatpush1.bf16.msra.mxu0 0
  %455 = vmatprep.subr.bf16.mxu0 0
  %456 = vmatpush1.bf16.msra.mxu0 0
  %457 = vmatprep.subr.bf16.mxu0 0
  %458 = vmatpush1.bf16.msra.mxu0 0
  %459 = vmatprep.subr.bf16.mxu0 0
  %460 = vmatpush1.bf16.msra.mxu0 0
  %461 = vmatprep.subr.bf16.mxu0 0
  %462 = vmatpush1.bf16.msra.mxu0 0
  %463 = vmatprep.subr.bf16.mxu0 0
  %464 = vmatpush1.bf16.msra.mxu0 0
  %465 = vmatprep.subr.bf16.mxu0 0
  %466 = vmatpush1.bf16.msra.mxu0 0
  %467 = vmatprep.subr.bf16.mxu0 0
  %468 = vmatpush1.bf16.msra.mxu0 0
  %469 = vmatprep.subr.bf16.mxu0 0
  %470 = vmatpush1.bf16.msra.mxu0 0
  %471 = vmatprep.subr.bf16.mxu0 0
  %472 = vmatpush1.bf16.msra.mxu0 0
  %473 = vmatprep.subr.bf16.mxu0 0
  %474 = vmatpush1.bf16.msra.mxu0 0
  %475 = vmatprep.subr.bf16.mxu0 0
  %476 = vmatpush1.bf16.msra.mxu0 0
  %477 = vmatprep.mubr.bf16.mxu0 0
  %478 = vmatmul.mubr.bf16.gmra.mrb[0].mxu0 %v443
  %v479 = vpop.f32.mrb[0].mxu0
  %v480 = vadd.f32 0.0, %v479
  %v481 = vpop.f32.mrb[0].mxu0
  %v482 = vpop.f32.mrb[0].mxu0
  %v483 = vpop.f32.mrb[0].mxu0
  %484 = vdwg.mxu0
  %v485 = vadd.f32 %v428, %v480
  %v486 = vtanh.pop %v485
  %487 = vst.msk [vmem:[#allocation3] sm:$0x3] %vm96, %v486
  %v488 = vld [vmem:[%s143] sm:$0x3]
  %v489 = vpack.c.bf16 %v486, %v486
  %v491 = vsel %vm52, %v489, 0
  %493 = vmatprep.subr.bf16.mxu0 0
  %494 = vmatpush1.bf16.msra.mxu0 %v438
  %495 = vmatprep.subr.bf16.mxu0 0
  %496 = vmatpush1.bf16.msra.mxu0 %v439
  %497 = vmatprep.subr.bf16.mxu0 0
  %498 = vmatpush1.bf16.msra.mxu0 0
  %499 = vmatprep.subr.bf16.mxu0 0
  %500 = vmatpush1.bf16.msra.mxu0 0
  %501 = vmatprep.subr.bf16.mxu0 0
  %502 = vmatpush1.bf16.msra.mxu0 0
  %503 = vmatprep.subr.bf16.mxu0 0
  %504 = vmatpush1.bf16.msra.mxu0 0
  %505 = vmatprep.subr.bf16.mxu0 0
  %506 = vmatpush1.bf16.msra.mxu0 0
  %507 = vmatprep.subr.bf16.mxu0 0
  %508 = vmatpush1.bf16.msra.mxu0 0
  %509 = vmatprep.subr.bf16.mxu0 0
  %510 = vmatpush1.bf16.msra.mxu0 0
  %511 = vmatprep.subr.bf16.mxu0 0
  %512 = vmatpush1.bf16.msra.mxu0 0
  %513 = vmatprep.subr.bf16.mxu0 0
  %514 = vmatpush1.bf16.msra.mxu0 0
  %515 = vmatprep.subr.bf16.mxu0 0
  %516 = vmatpush1.bf16.msra.mxu0 0
  %517 = vmatprep.subr.bf16.mxu0 0
  %518 = vmatpush1.bf16.msra.mxu0 0
  %519 = vmatprep.subr.bf16.mxu0 0
  %520 = vmatpush1.bf16.msra.mxu0 0
  %521 = vmatprep.subr.bf16.mxu0 0
  %522 = vmatpush1.bf16.msra.mxu0 0
  %523 = vmatprep.subr.bf16.mxu0 0
  %524 = vmatpush1.bf16.msra.mxu0 0
  %525 = vmatprep.mubr.bf16.mxu0 0
  %526 = vmatmul.mubr.bf16.gmra.mrb[0].mxu0 %v491
  %v527 = vpop.f32.mrb[0].mxu0
  %v528 = vadd.f32 0.0, %v527
  %v529 = vpop.f32.mrb[0].mxu0
  %v530 = vpop.f32.mrb[0].mxu0
  %v531 = vpop.f32.mrb[0].mxu0
  %532 = vdwg.mxu0
  %v533 = vadd.f32 %v488, %v528
  %v534 = vtanh.pop %v533
  %535 = vst.msk [vmem:[%s143] sm:$0x3] %vm96, %v534
  %v536 = vld [vmem:[%s190] sm:$0x3]
  %v537 = vpack.c.bf16 %v534, %v534
  %v539 = vsel %vm52, %v537, 0
  %541 = vmatprep.subr.bf16.mxu0 0
  %542 = vmatpush1.bf16.msra.mxu0 %v438
  %543 = vmatprep.subr.bf16.mxu0 0
  %544 = vmatpush1.bf16.msra.mxu0 %v439
  %545 = vmatprep.subr.bf16.mxu0 0
  %546 = vmatpush1.bf16.msra.mxu0 0
  %547 = vmatprep.subr.bf16.mxu0 0
  %548 = vmatpush1.bf16.msra.mxu0 0
  %549 = vmatprep.subr.bf16.mxu0 0
  %550 = vmatpush1.bf16.msra.mxu0 0
  %551 = vmatprep.subr.bf16.mxu0 0
  %552 = vmatpush1.bf16.msra.mxu0 0
  %553 = vmatprep.subr.bf16.mxu0 0
  %554 = vmatpush1.bf16.msra.mxu0 0
  %555 = vmatprep.subr.bf16.mxu0 0
  %556 = vmatpush1.bf16.msra.mxu0 0
  %557 = vmatprep.subr.bf16.mxu0 0
  %558 = vmatpush1.bf16.msra.mxu0 0
  %559 = vmatprep.subr.bf16.mxu0 0
  %560 = vmatpush1.bf16.msra.mxu0 0
  %561 = vmatprep.subr.bf16.mxu0 0
  %562 = vmatpush1.bf16.msra.mxu0 0
  %563 = vmatprep.subr.bf16.mxu0 0
  %564 = vmatpush1.bf16.msra.mxu0 0
  %565 = vmatprep.subr.bf16.mxu0 0
  %566 = vmatpush1.bf16.msra.mxu0 0
  %567 = vmatprep.subr.bf16.mxu0 0
  %568 = vmatpush1.bf16.msra.mxu0 0
  %569 = vmatprep.subr.bf16.mxu0 0
  %570 = vmatpush1.bf16.msra.mxu0 0
  %571 = vmatprep.subr.bf16.mxu0 0
  %572 = vmatpush1.bf16.msra.mxu0 0
  %573 = vmatprep.mubr.bf16.mxu0 0
  %574 = vmatmul.mubr.bf16.gmra.mrb[0].mxu0 %v539
  %v575 = vpop.f32.mrb[0].mxu0
  %v576 = vadd.f32 0.0, %v575
  %v577 = vpop.f32.mrb[0].mxu0
  %v578 = vpop.f32.mrb[0].mxu0
  %v579 = vpop.f32.mrb[0].mxu0
  %580 = vdwg.mxu0
  %v581 = vadd.f32 %v536, %v576
  %v582 = vtanh.pop %v581
  %583 = vst.msk [vmem:[%s190] sm:$0x3] %vm96, %v582
  %v584 = vld [vmem:[%s237] sm:$0x3]
  %v585 = vpack.c.bf16 %v582, %v582
  %v587 = vsel %vm52, %v585, 0
  %589 = vmatprep.subr.bf16.mxu0 0
  %590 = vmatpush1.bf16.msra.mxu0 %v438
  %591 = vmatprep.subr.bf16.mxu0 0
  %592 = vmatpush1.bf16.msra.mxu0 %v439
  %593 = vmatprep.subr.bf16.mxu0 0
  %594 = vmatpush1.bf16.msra.mxu0 0
  %595 = vmatprep.subr.bf16.mxu0 0
  %596 = vmatpush1.bf16.msra.mxu0 0
  %597 = vmatprep.subr.bf16.mxu0 0
  %598 = vmatpush1.bf16.msra.mxu0 0
  %599 = vmatprep.subr.bf16.mxu0 0
  %600 = vmatpush1.bf16.msra.mxu0 0
  %601 = vmatprep.subr.bf16.mxu0 0
  %602 = vmatpush1.bf16.msra.mxu0 0
  %603 = vmatprep.subr.bf16.mxu0 0
  %604 = vmatpush1.bf16.msra.mxu0 0
  %605 = vmatprep.subr.bf16.mxu0 0
  %606 = vmatpush1.bf16.msra.mxu0 0
  %607 = vmatprep.subr.bf16.mxu0 0
  %608 = vmatpush1.bf16.msra.mxu0 0
  %609 = vmatprep.subr.bf16.mxu0 0
  %610 = vmatpush1.bf16.msra.mxu0 0
  %611 = vmatprep.subr.bf16.mxu0 0
  %612 = vmatpush1.bf16.msra.mxu0 0
  %613 = vmatprep.subr.bf16.mxu0 0
  %614 = vmatpush1.bf16.msra.mxu0 0
  %615 = vmatprep.subr.bf16.mxu0 0
  %616 = vmatpush1.bf16.msra.mxu0 0
  %617 = vmatprep.subr.bf16.mxu0 0
  %618 = vmatpush1.bf16.msra.mxu0 0
  %619 = vmatprep.subr.bf16.mxu0 0
  %620 = vmatpush1.bf16.msra.mxu0 0
  %621 = vmatprep.mubr.bf16.mxu0 0
  %622 = vmatmul.mubr.bf16.gmra.mrb[0].mxu0 %v587
  %v623 = vpop.f32.mrb[0].mxu0
  %v624 = vadd.f32 0.0, %v623
  %v625 = vpop.f32.mrb[0].mxu0
  %v626 = vpop.f32.mrb[0].mxu0
  %v627 = vpop.f32.mrb[0].mxu0
  %628 = vdwg.mxu0
  %v629 = vadd.f32 %v584, %v624
  %v630 = vtanh.pop %v629
  %631 = vst.msk [vmem:[%s237] sm:$0x3] %vm96, %v630
  %v632 = vld [vmem:[%s284] sm:$0x3]
  %v633 = vpack.c.bf16 %v630, %v630
  %v635 = vsel %vm52, %v633, 0
  %637 = vmatprep.subr.bf16.mxu0 0
  %638 = vmatpush1.bf16.msra.mxu0 %v438
  %639 = vmatprep.subr.bf16.mxu0 0
  %640 = vmatpush1.bf16.msra.mxu0 %v439
  %641 = vmatprep.subr.bf16.mxu0 0
  %642 = vmatpush1.bf16.msra.mxu0 0
  %643 = vmatprep.subr.bf16.mxu0 0
  %644 = vmatpush1.bf16.msra.mxu0 0
  %645 = vmatprep.subr.bf16.mxu0 0
  %646 = vmatpush1.bf16.msra.mxu0 0
  %647 = vmatprep.subr.bf16.mxu0 0
  %648 = vmatpush1.bf16.msra.mxu0 0
  %649 = vmatprep.subr.bf16.mxu0 0
  %650 = vmatpush1.bf16.msra.mxu0 0
  %651 = vmatprep.subr.bf16.mxu0 0
  %652 = vmatpush1.bf16.msra.mxu0 0
  %653 = vmatprep.subr.bf16.mxu0 0
  %654 = vmatpush1.bf16.msra.mxu0 0
  %655 = vmatprep.subr.bf16.mxu0 0
  %656 = vmatpush1.bf16.msra.mxu0 0
  %657 = vmatprep.subr.bf16.mxu0 0
  %658 = vmatpush1.bf16.msra.mxu0 0
  %659 = vmatprep.subr.bf16.mxu0 0
  %660 = vmatpush1.bf16.msra.mxu0 0
  %661 = vmatprep.subr.bf16.mxu0 0
  %662 = vmatpush1.bf16.msra.mxu0 0
  %663 = vmatprep.subr.bf16.mxu0 0
  %664 = vmatpush1.bf16.msra.mxu0 0
  %665 = vmatprep.subr.bf16.mxu0 0
  %666 = vmatpush1.bf16.msra.mxu0 0
  %667 = vmatprep.subr.bf16.mxu0 0
  %668 = vmatpush1.bf16.msra.mxu0 0
  %669 = vmatprep.mubr.bf16.mxu0 0
  %670 = vmatmul.mubr.bf16.gmra.mrb[0].mxu0 %v635
  %v671 = vpop.f32.mrb[0].mxu0
  %v672 = vadd.f32 0.0, %v671
  %v673 = vpop.f32.mrb[0].mxu0
  %v674 = vpop.f32.mrb[0].mxu0
  %v675 = vpop.f32.mrb[0].mxu0
  %676 = vdwg.mxu0
  %v677 = vadd.f32 %v632, %v672
  %v678 = vtanh.pop %v677
  %679 = vst.msk [vmem:[%s284] sm:$0x3] %vm96, %v678
  %v680 = vld [vmem:[%s331] sm:$0x3]
  %v681 = vpack.c.bf16 %v678, %v678
  %v683 = vsel %vm52, %v681, 0
  %685 = vmatprep.subr.bf16.mxu0 0
  %686 = vmatpush1.bf16.msra.mxu0 %v438
  %687 = vmatprep.subr.bf16.mxu0 0
  %688 = vmatpush1.bf16.msra.mxu0 %v439
  %689 = vmatprep.subr.bf16.mxu0 0
  %690 = vmatpush1.bf16.msra.mxu0 0
  %691 = vmatprep.subr.bf16.mxu0 0
  %692 = vmatpush1.bf16.msra.mxu0 0
  %693 = vmatprep.subr.bf16.mxu0 0
  %694 = vmatpush1.bf16.msra.mxu0 0
  %695 = vmatprep.subr.bf16.mxu0 0
  %696 = vmatpush1.bf16.msra.mxu0 0
  %697 = vmatprep.subr.bf16.mxu0 0
  %698 = vmatpush1.bf16.msra.mxu0 0
  %699 = vmatprep.subr.bf16.mxu0 0
  %700 = vmatpush1.bf16.msra.mxu0 0
  %701 = vmatprep.subr.bf16.mxu0 0
  %702 = vmatpush1.bf16.msra.mxu0 0
  %703 = vmatprep.subr.bf16.mxu0 0
  %704 = vmatpush1.bf16.msra.mxu0 0
  %705 = vmatprep.subr.bf16.mxu0 0
  %706 = vmatpush1.bf16.msra.mxu0 0
  %707 = vmatprep.subr.bf16.mxu0 0
  %708 = vmatpush1.bf16.msra.mxu0 0
  %709 = vmatprep.subr.bf16.mxu0 0
  %710 = vmatpush1.bf16.msra.mxu0 0
  %711 = vmatprep.subr.bf16.mxu0 0
  %712 = vmatpush1.bf16.msra.mxu0 0
  %713 = vmatprep.subr.bf16.mxu0 0
  %714 = vmatpush1.bf16.msra.mxu0 0
  %715 = vmatprep.subr.bf16.mxu0 0
  %716 = vmatpush1.bf16.msra.mxu0 0
  %717 = vmatprep.mubr.bf16.mxu0 0
  %718 = vmatmul.mubr.bf16.gmra.mrb[0].mxu0 %v683
  %v719 = vpop.f32.mrb[0].mxu0
  %v720 = vadd.f32 0.0, %v719
  %v721 = vpop.f32.mrb[0].mxu0
  %v722 = vpop.f32.mrb[0].mxu0
  %v723 = vpop.f32.mrb[0].mxu0
  %724 = vdwg.mxu0
  %v725 = vadd.f32 %v680, %v720
  %v726 = vtanh.pop %v725
  %727 = vst.msk [vmem:[%s331] sm:$0x3] %vm96, %v726
  %v728 = vld [vmem:[%s378] sm:$0x3]
  %v729 = vpack.c.bf16 %v726, %v726
  %v731 = vsel %vm52, %v729, 0
  %733 = vmatprep.subr.bf16.mxu0 0
  %734 = vmatpush1.bf16.msra.mxu0 %v438
  %735 = vmatprep.subr.bf16.mxu0 0
  %736 = vmatpush1.bf16.msra.mxu0 %v439
  %737 = vmatprep.subr.bf16.mxu0 0
  %738 = vmatpush1.bf16.msra.mxu0 0
  %739 = vmatprep.subr.bf16.mxu0 0
  %740 = vmatpush1.bf16.msra.mxu0 0
  %741 = vmatprep.subr.bf16.mxu0 0
  %742 = vmatpush1.bf16.msra.mxu0 0
  %743 = vmatprep.subr.bf16.mxu0 0
  %744 = vmatpush1.bf16.msra.mxu0 0
  %745 = vmatprep.subr.bf16.mxu0 0
  %746 = vmatpush1.bf16.msra.mxu0 0
  %747 = vmatprep.subr.bf16.mxu0 0
  %748 = vmatpush1.bf16.msra.mxu0 0
  %749 = vmatprep.subr.bf16.mxu0 0
  %750 = vmatpush1.bf16.msra.mxu0 0
  %751 = vmatprep.subr.bf16.mxu0 0
  %752 = vmatpush1.bf16.msra.mxu0 0
  %753 = vmatprep.subr.bf16.mxu0 0
  %754 = vmatpush1.bf16.msra.mxu0 0
  %755 = vmatprep.subr.bf16.mxu0 0
  %756 = vmatpush1.bf16.msra.mxu0 0
  %757 = vmatprep.subr.bf16.mxu0 0
  %758 = vmatpush1.bf16.msra.mxu0 0
  %759 = vmatprep.subr.bf16.mxu0 0
  %760 = vmatpush1.bf16.msra.mxu0 0
  %761 = vmatprep.subr.bf16.mxu0 0
  %762 = vmatpush1.bf16.msra.mxu0 0
  %763 = vmatprep.subr.bf16.mxu0 0
  %764 = vmatpush1.bf16.msra.mxu0 0
  %765 = vmatprep.mubr.bf16.mxu0 0
  %766 = vmatmul.mubr.bf16.gmra.mrb[0].mxu0 %v731
  %v767 = vpop.f32.mrb[0].mxu0
  %v768 = vadd.f32 0.0, %v767
  %v769 = vpop.f32.mrb[0].mxu0
  %v770 = vpop.f32.mrb[0].mxu0
  %v771 = vpop.f32.mrb[0].mxu0
  %772 = vdwg.mxu0
  %v773 = vadd.f32 %v728, %v768
  %v774 = vtanh.pop %v773
  %775 = vst.msk [vmem:[%s378] sm:$0x3] %vm96, %v774
  %v776 = vld [vmem:[%s425] sm:$0x3]
  %v777 = vpack.c.bf16 %v774, %v774
  %v779 = vsel %vm52, %v777, 0
  %781 = vmatprep.subr.bf16.mxu0 0
  %782 = vmatpush1.bf16.msra.mxu0 %v438
  %783 = vmatprep.subr.bf16.mxu0 0
  %784 = vmatpush1.bf16.msra.mxu0 %v439
  %785 = vmatprep.subr.bf16.mxu0 0
  %786 = vmatpush1.bf16.msra.mxu0 0
  %787 = vmatprep.subr.bf16.mxu0 0
  %788 = vmatpush1.bf16.msra.mxu0 0
  %789 = vmatprep.subr.bf16.mxu0 0
  %790 = vmatpush1.bf16.msra.mxu0 0
  %791 = vmatprep.subr.bf16.mxu0 0
  %792 = vmatpush1.bf16.msra.mxu0 0
  %793 = vmatprep.subr.bf16.mxu0 0
  %794 = vmatpush1.bf16.msra.mxu0 0
  %795 = vmatprep.subr.bf16.mxu0 0
  %796 = vmatpush1.bf16.msra.mxu0 0
  %797 = vmatprep.subr.bf16.mxu0 0
  %798 = vmatpush1.bf16.msra.mxu0 0
  %799 = vmatprep.subr.bf16.mxu0 0
  %800 = vmatpush1.bf16.msra.mxu0 0
  %801 = vmatprep.subr.bf16.mxu0 0
  %802 = vmatpush1.bf16.msra.mxu0 0
  %803 = vmatprep.subr.bf16.mxu0 0
  %804 = vmatpush1.bf16.msra.mxu0 0
  %805 = vmatprep.subr.bf16.mxu0 0
  %806 = vmatpush1.bf16.msra.mxu0 0
  %807 = vmatprep.subr.bf16.mxu0 0
  %808 = vmatpush1.bf16.msra.mxu0 0
  %809 = vmatprep.subr.bf16.mxu0 0
  %810 = vmatpush1.bf16.msra.mxu0 0
  %811 = vmatprep.subr.bf16.mxu0 0
  %812 = vmatpush1.bf16.msra.mxu0 0
  %813 = vmatprep.mubr.bf16.mxu0 0
  %814 = vmatmul.mubr.bf16.gmra.mrb[0].mxu0 %v779
  %v815 = vpop.f32.mrb[0].mxu0
  %v816 = vadd.f32 0.0, %v815
  %v817 = vpop.f32.mrb[0].mxu0
  %v818 = vpop.f32.mrb[0].mxu0
  %v819 = vpop.f32.mrb[0].mxu0
  %820 = vdwg.mxu0
  %v821 = vadd.f32 %v776, %v816
  %v822 = vtanh.pop %v821
  %823 = vst.msk [vmem:[%s425] sm:$0x3] %vm96, %v822
  %824 = vst.msk [vmem:[#allocation2] sm:$0x3] %vm96, %v822
  %v825 = vld [vmem:[#allocation3] sm:$0x3]
  %v828 = vunpack.c.l.s4 1966171168
  %v829 = vunpack.c.0.s8 %v828
  %v830 = vlaneseq
  %v831 = vshrl.u32 %v830, 7
  %v832 = vsub.s32 %v829, %v831
  %v833 = vrot.slane %v825, %v832
  %v834 = vcombine.high %v833, %v833
  %v836 = vunpack.c.l.s4 1966171168
  %v837 = vunpack.c.0.s8 %v836
  %v838 = vlaneseq
  %v839 = vshrl.u32 %v838, 7
  %v840 = vsub.s32 %v837, %v839
  %v841 = vrot.slane %v833, %v840
  %v843 = vunpack.c.l.s4 1966171168
  %v844 = vunpack.c.0.s8 %v843
  %v845 = vlaneseq
  %v846 = vshrl.u32 %v845, 7
  %v847 = vsub.s32 %v844, %v846
  %v848 = vrot.slane %v834, %v847
  %vm851 = vcmask 253952
  %852 = vst.msk [vmem:[%s4] sm:$0x1] %vm851, %v841
  %853 = vst.msk [vmem:[%s4 + $0x8] sm:$0x1] %vm851, %v848
  %v854 = vld [vmem:[%s143] sm:$0x3]
  %v857 = vunpack.c.l.s4 1966171168
  %v858 = vunpack.c.0.s8 %v857
  %v859 = vlaneseq
  %v860 = vshrl.u32 %v859, 7
  %v861 = vsub.s32 %v858, %v860
  %v862 = vrot.slane %v854, %v861
  %v863 = vcombine.high %v862, %v862
  %v865 = vunpack.c.l.s4 1966171168
  %v866 = vunpack.c.0.s8 %v865
  %v867 = vlaneseq
  %v868 = vshrl.u32 %v867, 7
  %v869 = vsub.s32 %v866, %v868
  %v870 = vrot.slane %v862, %v869
  %v872 = vunpack.c.l.s4 1966171168
  %v873 = vunpack.c.0.s8 %v872
  %v874 = vlaneseq
  %v875 = vshrl.u32 %v874, 7
  %v876 = vsub.s32 %v873, %v875
  %v877 = vrot.slane %v863, %v876
  %880 = vst.msk [vmem:[%s4 + $0x1] sm:$0x1] %vm851, %v870
  %881 = vst.msk [vmem:[%s4 + $0x9] sm:$0x1] %vm851, %v877
  %v882 = vld [vmem:[%s190] sm:$0x3]
  %v885 = vunpack.c.l.s4 1966171168
  %v886 = vunpack.c.0.s8 %v885
  %v887 = vlaneseq
  %v888 = vshrl.u32 %v887, 7
  %v889 = vsub.s32 %v886, %v888
  %v890 = vrot.slane %v882, %v889
  %v891 = vcombine.high %v890, %v890
  %v893 = vunpack.c.l.s4 1966171168
  %v894 = vunpack.c.0.s8 %v893
  %v895 = vlaneseq
  %v896 = vshrl.u32 %v895, 7
  %v897 = vsub.s32 %v894, %v896
  %v898 = vrot.slane %v890, %v897
  %v900 = vunpack.c.l.s4 1966171168
  %v901 = vunpack.c.0.s8 %v900
  %v902 = vlaneseq
  %v903 = vshrl.u32 %v902, 7
  %v904 = vsub.s32 %v901, %v903
  %v905 = vrot.slane %v891, %v904
  %908 = vst.msk [vmem:[%s4 + $0x2] sm:$0x1] %vm851, %v898
  %909 = vst.msk [vmem:[%s4 + $0xa] sm:$0x1] %vm851, %v905
  %v910 = vld [vmem:[%s237] sm:$0x3]
  %v913 = vunpack.c.l.s4 1966171168
  %v914 = vunpack.c.0.s8 %v913
  %v915 = vlaneseq
  %v916 = vshrl.u32 %v915, 7
  %v917 = vsub.s32 %v914, %v916
  %v918 = vrot.slane %v910, %v917
  %v919 = vcombine.high %v918, %v918
  %v921 = vunpack.c.l.s4 1966171168
  %v922 = vunpack.c.0.s8 %v921
  %v923 = vlaneseq
  %v924 = vshrl.u32 %v923, 7
  %v925 = vsub.s32 %v922, %v924
  %v926 = vrot.slane %v918, %v925
  %v928 = vunpack.c.l.s4 1966171168
  %v929 = vunpack.c.0.s8 %v928
  %v930 = vlaneseq
  %v931 = vshrl.u32 %v930, 7
  %v932 = vsub.s32 %v929, %v931
  %v933 = vrot.slane %v919, %v932
  %936 = vst.msk [vmem:[%s4 + $0x3] sm:$0x1] %vm851, %v926
  %937 = vst.msk [vmem:[%s4 + $0xb] sm:$0x1] %vm851, %v933
  %v938 = vld [vmem:[%s284] sm:$0x3]
  %v941 = vunpack.c.l.s4 1966171168
  %v942 = vunpack.c.0.s8 %v941
  %v943 = vlaneseq
  %v944 = vshrl.u32 %v943, 7
  %v945 = vsub.s32 %v942, %v944
  %v946 = vrot.slane %v938, %v945
  %v947 = vcombine.high %v946, %v946
  %v949 = vunpack.c.l.s4 1966171168
  %v950 = vunpack.c.0.s8 %v949
  %v951 = vlaneseq
  %v952 = vshrl.u32 %v951, 7
  %v953 = vsub.s32 %v950, %v952
  %v954 = vrot.slane %v946, %v953
  %v956 = vunpack.c.l.s4 1966171168
  %v957 = vunpack.c.0.s8 %v956
  %v958 = vlaneseq
  %v959 = vshrl.u32 %v958, 7
  %v960 = vsub.s32 %v957, %v959
  %v961 = vrot.slane %v947, %v960
  %964 = vst.msk [vmem:[%s4 + $0x4] sm:$0x1] %vm851, %v954
  %965 = vst.msk [vmem:[%s4 + $0xc] sm:$0x1] %vm851, %v961
  %v966 = vld [vmem:[%s331] sm:$0x3]
  %v969 = vunpack.c.l.s4 1966171168
  %v970 = vunpack.c.0.s8 %v969
  %v971 = vlaneseq
  %v972 = vshrl.u32 %v971, 7
  %v973 = vsub.s32 %v970, %v972
  %v974 = vrot.slane %v966, %v973
  %v975 = vcombine.high %v974, %v974
  %v977 = vunpack.c.l.s4 1966171168
  %v978 = vunpack.c.0.s8 %v977
  %v979 = vlaneseq
  %v980 = vshrl.u32 %v979, 7
  %v981 = vsub.s32 %v978, %v980
  %v982 = vrot.slane %v974, %v981
  %v984 = vunpack.c.l.s4 1966171168
  %v985 = vunpack.c.0.s8 %v984
  %v986 = vlaneseq
  %v987 = vshrl.u32 %v986, 7
  %v988 = vsub.s32 %v985, %v987
  %v989 = vrot.slane %v975, %v988
  %992 = vst.msk [vmem:[%s4 + $0x5] sm:$0x1] %vm851, %v982
  %993 = vst.msk [vmem:[%s4 + $0xd] sm:$0x1] %vm851, %v989
  %v994 = vld [vmem:[%s378] sm:$0x3]
  %v997 = vunpack.c.l.s4 1966171168
  %v998 = vunpack.c.0.s8 %v997
  %v999 = vlaneseq
  %v1000 = vshrl.u32 %v999, 7
  %v1001 = vsub.s32 %v998, %v1000
  %v1002 = vrot.slane %v994, %v1001
  %v1003 = vcombine.high %v1002, %v1002
  %v1005 = vunpack.c.l.s4 1966171168
  %v1006 = vunpack.c.0.s8 %v1005
  %v1007 = vlaneseq
  %v1008 = vshrl.u32 %v1007, 7
  %v1009 = vsub.s32 %v1006, %v1008
  %v1010 = vrot.slane %v1002, %v1009
  %v1012 = vunpack.c.l.s4 1966171168
  %v1013 = vunpack.c.0.s8 %v1012
  %v1014 = vlaneseq
  %v1015 = vshrl.u32 %v1014, 7
  %v1016 = vsub.s32 %v1013, %v1015
  %v1017 = vrot.slane %v1003, %v1016
  %1020 = vst.msk [vmem:[%s4 + $0x6] sm:$0x1] %vm851, %v1010
  %1021 = vst.msk [vmem:[%s4 + $0xe] sm:$0x1] %vm851, %v1017
  %v1022 = vld [vmem:[%s425] sm:$0x3]
  %v1025 = vunpack.c.l.s4 1966171168
  %v1026 = vunpack.c.0.s8 %v1025
  %v1027 = vlaneseq
  %v1028 = vshrl.u32 %v1027, 7
  %v1029 = vsub.s32 %v1026, %v1028
  %v1030 = vrot.slane %v1022, %v1029
  %v1031 = vcombine.high %v1030, %v1030
  %v1033 = vunpack.c.l.s4 1966171168
  %v1034 = vunpack.c.0.s8 %v1033
  %v1035 = vlaneseq
  %v1036 = vshrl.u32 %v1035, 7
  %v1037 = vsub.s32 %v1034, %v1036
  %v1038 = vrot.slane %v1030, %v1037
  %v1040 = vunpack.c.l.s4 1966171168
  %v1041 = vunpack.c.0.s8 %v1040
  %v1042 = vlaneseq
  %v1043 = vshrl.u32 %v1042, 7
  %v1044 = vsub.s32 %v1041, %v1043
  %v1045 = vrot.slane %v1031, %v1044
  %1048 = vst.msk [vmem:[%s4 + $0x7] sm:$0x1] %vm851, %v1038
  %1049 = vst.msk [vmem:[%s4 + $0xf] sm:$0x1] %vm851, %v1045
  // Predicated region
  $region22: #{encoder_forward.1} parent=0 // pred_check
    _
  $region23: #{encoder_forward.1} parent=0 // pred_check_branch
    %1051 = sbr.rel (0) target = $region25
  $region24: #{encoder_forward.1} parent=0 // pred_region
    _
  $region25: #{encoder_forward.1} parent=0 // pred_fallthru
    _
  // Predicated region
  $region26: #{encoder_forward.1} parent=0 // pred_check
    _
  $region27: #{encoder_forward.1} parent=0 // pred_check_branch
    %1053 = sbr.rel (0) target = $region29
  $region28: #{encoder_forward.1} parent=0 // pred_region
    _
  $region29: #{encoder_forward.1} parent=0 // pred_fallthru
    _

</llo_original>
